<compile_context>
chip_gen: v7x
topology: tpu7x:2x2x1
jax: 0.10.0
libtpu: 0.0.40
codegen_flags: <defaults>
</compile_context>

<pallas_src>
import functools

import jax
import jax.numpy as jnp
from jax.experimental import pallas as pl
from jax.experimental.pallas import tpu as pltpu


def autopad(k, p=None):
    if p is None:
        p = k // 2 if isinstance(k, int) else [x // 2 for x in k]
    return p


def _round_up(x, m):
    return (x + m - 1) // m * m


def _conv_bn_silu_kernel(x_hbm, w_ref, bias_ref, o_ref, xbuf, dma_sem,
                         *, stride, k, th):
    """One (batch, row-tile) grid step of fused conv + folded-BN + SiLU.

    x_hbm:    (N, Hp, Wp, C1p)   padded bf16 NHWC input, resident in HBM
    w_ref:    (k*k*C1p, C2p)     bf16 weights (HWIO-flat), BN scale pre-folded
    bias_ref: (1, C2p)           f32 folded BN bias
    o_ref:    (1, TH, Wout, C2p) output tile
    xbuf:     (span_h, Wp, C1p)  VMEM scratch for the halo'd input row window
    dma_sem:  DMA completion semaphore
    """
    n = pl.program_id(0)
    h = pl.program_id(1)

    span_h = (th - 1) * stride + k                    # input rows for this tile
    Wout, C2p = o_ref.shape[2], o_ref.shape[3]
    C1p = xbuf.shape[2]

    # --- manual DMA of just this tile's (halo'd) input rows ------------------
    row0 = h * (th * stride)
    cp = pltpu.make_async_copy(x_hbm.at[n, pl.ds(row0, span_h)], xbuf, dma_sem)
    cp.start()
    cp.wait()
    # TODO(synk): double-buffer xbuf and prefetch the next tile's rows so this
    # DMA overlaps with compute.

    xv = xbuf[...]                                    # (span_h, Wp, C1p) bf16

    # --- in-VMEM im2col: one big-K MXU contraction instead of k*k tiny ones --
    # TODO(synk): for stride > 1 use ref-level strided loads (pl.ds stride=)
    # instead of strided slicing of the materialized value.
    taps = []
    for ky in range(k):
        for kx in range(k):
            patch = xv[ky:ky + (th - 1) * stride + 1:stride,
                       kx:kx + (Wout - 1) * stride + 1:stride, :]
            taps.append(patch.reshape(th * Wout, C1p))
    lhs = jnp.concatenate(taps, axis=1)               # (TH*Wout, k*k*C1p) bf16

    acc = jnp.dot(lhs, w_ref[...],
                  preferred_element_type=jnp.float32)  # (TH*Wout, C2p) f32

    # --- epilogue: folded-BN bias + SiLU --------------------------------------
    z = acc + bias_ref[...]
    y = z * jax.nn.sigmoid(z)                          # SiLU(x) = x * sigmoid(x)
    o_ref[0] = y.reshape(th, Wout, C2p).astype(o_ref.dtype)


def conv_bn_silu(x_nchw, weight_oihw, gamma, beta, running_mean, running_var,
                 *, stride=1, padding=None, eps=1e-5, row_tile=64):
    """Equivalent of yolov5 Conv.forward (act=True, groups=1) in eval mode."""
    N, C1, H, W = x_nchw.shape
    C2, C1w, k, k2 = weight_oihw.shape
    assert k == k2 and C1w == C1  # TODO(synk): groups > 1 not implemented
    pad = autopad(k, padding)

    Hout = (H + 2 * pad - k) // stride + 1
    Wout = (W + 2 * pad - k) // stride + 1

    # Channel padding to 128 lanes (lane-dense loads/stores, full MXU width).
    C1p = _round_up(C1, 128)
    C2p = _round_up(C2, 128)
    # TODO(synk): for deep layers (large C2), add a C2 grid axis so the
    # resident weight block stays small.

    # Spatial row tiling (bounds VMEM; halo of k-1 rows handled by manual DMA).
    TH = min(row_tile, Hout)
    n_h = (Hout + TH - 1) // TH
    Hout_p = n_h * TH

    Wp = _round_up(W + 2 * pad, 8)                          # sublane-friendly
    Hp = max(H + 2 * pad, (Hout_p - 1) * stride + k)        # extra bottom rows
    span_h = (TH - 1) * stride + k

    # --- glue: layout conversion, padding, BN folding (plain JAX) ------------
    # TODO(synk): running the surrounding network in NHWC would remove the
    # NCHW<->NHWC transposes (and padding could be fused into the kernel).
    x = jnp.transpose(x_nchw, (0, 2, 3, 1))                 # NCHW -> NHWC
    x = jnp.pad(x, ((0, 0),
                    (pad, Hp - H - pad),
                    (pad, Wp - W - pad),
                    (0, C1p - C1)))
    x = x.astype(jnp.bfloat16)

    inv_std = 1.0 / jnp.sqrt(running_var + eps)
    scale = gamma * inv_std                                 # (C2,)
    bias = beta - running_mean * scale                      # (C2,)

    w = jnp.transpose(weight_oihw, (2, 3, 1, 0))            # OIHW -> HWIO
    w = w * scale[None, None, None, :]                      # fold BN scale
    w = jnp.pad(w, ((0, 0), (0, 0), (0, C1p - C1), (0, C2p - C2)))
    w = w.reshape(k * k * C1p, C2p).astype(jnp.bfloat16)
    bias_p = jnp.pad(bias, (0, C2p - C2)).reshape(1, C2p).astype(jnp.float32)

    out_nhwc = pl.pallas_call(
        functools.partial(_conv_bn_silu_kernel, stride=stride, k=k, th=TH),
        out_shape=jax.ShapeDtypeStruct((N, Hout_p, Wout, C2p), x_nchw.dtype),
        grid=(N, n_h),
        in_specs=[
            pl.BlockSpec(memory_space=pl.ANY),              # x stays in HBM
            pl.BlockSpec((k * k * C1p, C2p), lambda n, h: (0, 0)),  # resident
            pl.BlockSpec((1, C2p), lambda n, h: (0, 0)),
        ],
        out_specs=pl.BlockSpec((1, TH, Wout, C2p), lambda n, h: (n, h, 0, 0)),
        scratch_shapes=[
            pltpu.VMEM((span_h, Wp, C1p), jnp.bfloat16),
            pltpu.SemaphoreType.DMA(()),
        ],
        compiler_params=pltpu.CompilerParams(
            dimension_semantics=("parallel", "parallel"),
            vmem_limit_bytes=32 * 1024 * 1024,
        ),
    )(x, w, bias_p)

    out_nhwc = out_nhwc[:, :Hout, :, :C2]                   # crop row/ch pad
    return jnp.transpose(out_nhwc, (0, 3, 1, 2))            # NHWC -> NCHW


def _reference(x_nchw, weight_oihw, gamma, beta, running_mean, running_var,
               *, stride, padding, eps=1e-5):
    """Plain-JAX (all f32) reference for correctness checking."""
    y = jax.lax.conv_general_dilated(
        x_nchw, weight_oihw, window_strides=(stride, stride),
        padding=[(padding, padding), (padding, padding)],
        dimension_numbers=("NCHW", "OIHW", "NCHW"))
    inv_std = 1.0 / jnp.sqrt(running_var + eps)
    scale = (gamma * inv_std)[None, :, None, None]
    bias = (beta - running_mean * gamma * inv_std)[None, :, None, None]
    z = y * scale + bias
    return z * jax.nn.sigmoid(z)


if __name__ == "__main__":
    # Conv(c1=4, c2=8, k=3, s=1) on input (2, 4, 16, 16)
    c1, c2, k, s = 4, 8, 3, 1
    p = autopad(k, None)

    key = jax.random.PRNGKey(0)
    kx_, kw_, kg_, kb_, km_, kv_ = jax.random.split(key, 6)

    x = jax.random.normal(kx_, (2, c1, 16, 16), dtype=jnp.float32)
    fan_in = c1 * k * k
    weight = jax.random.normal(kw_, (c2, c1, k, k), dtype=jnp.float32) / jnp.sqrt(fan_in)
    gamma = 1.0 + 0.1 * jax.random.normal(kg_, (c2,), dtype=jnp.float32)
    beta = 0.1 * jax.random.normal(kb_, (c2,), dtype=jnp.float32)
    running_mean = 0.1 * jax.random.normal(km_, (c2,), dtype=jnp.float32)
    running_var = 1.0 + 0.1 * jax.random.uniform(kv_, (c2,), dtype=jnp.float32)

    # row_tile=8 -> grid (2, 2): exercises the halo'd spatial tiling path.
    out = conv_bn_silu(x, weight, gamma, beta, running_mean, running_var,
                       stride=s, padding=p, row_tile=8)
    out = jax.block_until_ready(out)

    ref = _reference(x, weight, gamma, beta, running_mean, running_var,
                     stride=s, padding=p)
    assert out.shape == ref.shape == (2, c2, 16, 16)
    # bf16 activations/weights with f32 accumulation => ~1e-2-level deviation
    # vs the all-f32 reference is expected.
    assert jnp.allclose(out, ref, atol=5e-2, rtol=5e-2), "mismatch vs reference"

    print("KERNEL_OK")
</pallas_src>

<mosaic_0001>
module attributes {stable_mosaic.version = 11 : i64} {
  func.func @_conv_bn_silu_kernel(%arg0: i32, %arg1: i32, %arg2: memref<2x18x24x128xbf16, #tpu.memory_space<any>>, %arg3: memref<1152x128xbf16, #tpu.memory_space<vmem>>, %arg4: memref<1x128xf32, #tpu.memory_space<vmem>>, %arg5: memref<1x8x16x128xf32, #tpu.memory_space<vmem>>, %arg6: memref<10x24x128xbf16, #tpu.memory_space<vmem>>, %arg7: memref<!tpu.dma_semaphore, #tpu.memory_space<semaphore_mem>>) attributes {dimension_semantics = [#tpu.dimension_semantics<parallel>, #tpu.dimension_semantics<parallel>], iteration_bounds = array<i64: 2, 2>, scalar_prefetch = 0 : i64, scratch_operands = 2 : i64, tpu.core_type = #tpu.core_type<tc>, window_params = [{}, {pipeline_mode = #tpu.pipeline_mode<synchronous>, transform_indices = @transform_1, window_bounds = array<i64: 1152, 128>}, {pipeline_mode = #tpu.pipeline_mode<synchronous>, transform_indices = @transform_2, window_bounds = array<i64: 1, 128>}, {transform_indices = @transform_3, window_bounds = array<i64: 1, 8, 16, 128>}]} {
    %c8_i32 = arith.constant 8 : i32
    %0 = arith.muli %arg1, %c8_i32 : i32
    %c0_i32 = arith.constant 0 : i32
    %c0_i32_0 = arith.constant 0 : i32
    %1 = tpu.memref_slice %arg2[%arg0, %0, %c0_i32, %c0_i32_0] : memref<2x18x24x128xbf16, #tpu.memory_space<any>> -> memref<1x10x24x128xbf16, #tpu.memory_space<any>>
    %2 = tpu.memref_squeeze %1 : memref<1x10x24x128xbf16, #tpu.memory_space<any>> -> memref<10x24x128xbf16, #tpu.memory_space<any>>
    tpu.enqueue_dma source(%2 : memref<10x24x128xbf16, #tpu.memory_space<any>>) target(%arg6 : memref<10x24x128xbf16, #tpu.memory_space<vmem>>) target_semaphore(%arg7 : memref<!tpu.dma_semaphore, #tpu.memory_space<semaphore_mem>>)
    %c0_i32_1 = arith.constant 0 : i32
    %c0_i32_2 = arith.constant 0 : i32
    %3 = tpu.memref_slice %arg2[%arg0, %0, %c0_i32_1, %c0_i32_2] : memref<2x18x24x128xbf16, #tpu.memory_space<any>> -> memref<1x10x24x128xbf16, #tpu.memory_space<any>>
    %4 = tpu.memref_squeeze %3 : memref<1x10x24x128xbf16, #tpu.memory_space<any>> -> memref<10x24x128xbf16, #tpu.memory_space<any>>
    tpu.wait_dma2 semaphore(%arg7 : memref<!tpu.dma_semaphore, #tpu.memory_space<semaphore_mem>>) src(%4 : memref<10x24x128xbf16, #tpu.memory_space<any>>) dst(%arg6 : memref<10x24x128xbf16, #tpu.memory_space<vmem>>)
    %c0 = arith.constant 0 : index
    %c0_3 = arith.constant 0 : index
    %c0_4 = arith.constant 0 : index
    %5 = vector.load %arg6[%c0, %c0_3, %c0_4] : memref<10x24x128xbf16, #tpu.memory_space<vmem>>, vector<10x24x128xbf16>
    %6 = vector.extract_strided_slice %5 {offsets = [0, 0, 0], sizes = [8, 16, 128], strides = [1, 1, 1]} : vector<10x24x128xbf16> to vector<8x16x128xbf16>
    %7 = vector.shape_cast %6 : vector<8x16x128xbf16> to vector<128x128xbf16>
    %8 = vector.extract_strided_slice %5 {offsets = [0, 1, 0], sizes = [8, 16, 128], strides = [1, 1, 1]} : vector<10x24x128xbf16> to vector<8x16x128xbf16>
    %9 = vector.shape_cast %8 : vector<8x16x128xbf16> to vector<128x128xbf16>
    %10 = vector.extract_strided_slice %5 {offsets = [0, 2, 0], sizes = [8, 16, 128], strides = [1, 1, 1]} : vector<10x24x128xbf16> to vector<8x16x128xbf16>
    %11 = vector.shape_cast %10 : vector<8x16x128xbf16> to vector<128x128xbf16>
    %12 = vector.extract_strided_slice %5 {offsets = [1, 0, 0], sizes = [8, 16, 128], strides = [1, 1, 1]} : vector<10x24x128xbf16> to vector<8x16x128xbf16>
    %13 = vector.shape_cast %12 : vector<8x16x128xbf16> to vector<128x128xbf16>
    %14 = vector.extract_strided_slice %5 {offsets = [1, 1, 0], sizes = [8, 16, 128], strides = [1, 1, 1]} : vector<10x24x128xbf16> to vector<8x16x128xbf16>
    %15 = vector.shape_cast %14 : vector<8x16x128xbf16> to vector<128x128xbf16>
    %16 = vector.extract_strided_slice %5 {offsets = [1, 2, 0], sizes = [8, 16, 128], strides = [1, 1, 1]} : vector<10x24x128xbf16> to vector<8x16x128xbf16>
    %17 = vector.shape_cast %16 : vector<8x16x128xbf16> to vector<128x128xbf16>
    %18 = vector.extract_strided_slice %5 {offsets = [2, 0, 0], sizes = [8, 16, 128], strides = [1, 1, 1]} : vector<10x24x128xbf16> to vector<8x16x128xbf16>
    %19 = vector.shape_cast %18 : vector<8x16x128xbf16> to vector<128x128xbf16>
    %20 = vector.extract_strided_slice %5 {offsets = [2, 1, 0], sizes = [8, 16, 128], strides = [1, 1, 1]} : vector<10x24x128xbf16> to vector<8x16x128xbf16>
    %21 = vector.shape_cast %20 : vector<8x16x128xbf16> to vector<128x128xbf16>
    %22 = vector.extract_strided_slice %5 {offsets = [2, 2, 0], sizes = [8, 16, 128], strides = [1, 1, 1]} : vector<10x24x128xbf16> to vector<8x16x128xbf16>
    %23 = vector.shape_cast %22 : vector<8x16x128xbf16> to vector<128x128xbf16>
    %24 = tpu.concatenate %7, %9, %11, %13, %15, %17, %19, %21, %23 in 1 : vector<128x128xbf16>, vector<128x128xbf16>, vector<128x128xbf16>, vector<128x128xbf16>, vector<128x128xbf16>, vector<128x128xbf16>, vector<128x128xbf16>, vector<128x128xbf16>, vector<128x128xbf16> -> vector<128x1152xbf16>
    %c0_5 = arith.constant 0 : index
    %c0_6 = arith.constant 0 : index
    %25 = vector.load %arg3[%c0_5, %c0_6] : memref<1152x128xbf16, #tpu.memory_space<vmem>>, vector<1152x128xbf16>
    %cst = arith.constant dense<0.000000e+00> : vector<128x128xf32>
    %26 = tpu.matmul %24, %25, %cst {dimension_numbers = #tpu.dot_dimension_numbers<[1], [0], [0], [1], [0, 0, 1, 1], [], []>} : vector<128x1152xbf16>, vector<1152x128xbf16>, vector<128x128xf32> -> vector<128x128xf32>
    %c0_7 = arith.constant 0 : index
    %c0_8 = arith.constant 0 : index
    %27 = vector.load %arg4[%c0_7, %c0_8] : memref<1x128xf32, #tpu.memory_space<vmem>>, vector<1x128xf32>
    %28 = vector.broadcast %27 : vector<1x128xf32> to vector<128x128xf32>
    %29 = arith.addf %26, %28 : vector<128x128xf32>
    %30 = arith.negf %29 : vector<128x128xf32>
    %31 = math.exp %30 : vector<128x128xf32>
    %cst_9 = arith.constant 1.000000e+00 : f32
    %32 = vector.broadcast %cst_9 : f32 to vector<128x128xf32>
    %33 = arith.addf %32, %31 : vector<128x128xf32>
    %34 = arith.divf %32, %33 : vector<128x128xf32>
    %35 = arith.mulf %29, %34 : vector<128x128xf32>
    %36 = vector.shape_cast %35 : vector<128x128xf32> to vector<8x16x128xf32>
    %c0_10 = arith.constant 0 : index
    %c0_11 = arith.constant 0 : index
    %c0_12 = arith.constant 0 : index
    %c0_13 = arith.constant 0 : index
    %37 = vector.load %arg5[%c0_10, %c0_11, %c0_12, %c0_13] : memref<1x8x16x128xf32, #tpu.memory_space<vmem>>, vector<1x8x16x128xf32>
    %38 = vector.shape_cast %37 : vector<1x8x16x128xf32> to vector<8x16x128xf32>
    %39 = vector.shape_cast %36 : vector<8x16x128xf32> to vector<1x8x16x128xf32>
    tpu.vector_store %arg5[%c0_10, %c0_11, %c0_12, %c0_13], %39 {strides = array<i32>} : memref<1x8x16x128xf32, #tpu.memory_space<vmem>>, vector<1x8x16x128xf32>,
    return
  }
  func.func @transform_1(%arg0: i32, %arg1: i32) -> (i32, i32) {
    %c0_i32 = arith.constant 0 : i32
    %c0_i32_0 = arith.constant 0 : i32
    %c0_i32_1 = arith.constant 0 : i32
    return %c0_i32, %c0_i32_0 : i32, i32
  }
  func.func @transform_2(%arg0: i32, %arg1: i32) -> (i32, i32) {
    %c0_i32 = arith.constant 0 : i32
    %c0_i32_0 = arith.constant 0 : i32
    %c0_i32_1 = arith.constant 0 : i32
    return %c0_i32, %c0_i32_0 : i32, i32
  }
  func.func @transform_3(%arg0: i32, %arg1: i32) -> (i32, i32, i32, i32) {
    %c0_i32 = arith.constant 0 : i32
    %c0_i32_0 = arith.constant 0 : i32
    %c0_i32_1 = arith.constant 0 : i32
    return %arg0, %arg1, %c0_i32, %c0_i32_0 : i32, i32, i32, i32
  }
}

</mosaic_0001>

<llo_original>
// kernel: tpu_custom_call.1
$region0: #{tpu_custom_call.1}
  #allocation0 [shape = 'u32[]', space=smem, size = 0x4, offset = 0x4, fixed_abs, tag = 'smem constant byte address 0x4 - core index']
  #allocation1 [shape = 'u32[144,128]{1,0:T(1,128)}', space=vmem, size = 0x12000, scoped, tag = 'internal scratch']
  #allocation2 [shape = 'bf16[10,24,128]{2,1,0:T(8,128)(2,1)}', space=vmem, size = 0xf000, scoped, tag = 'scratch operand']
  #allocation3 [shape = 's32[1]{0}', space=sflag, size = 0x4, scoped, tag = 'scratch operand']
  #allocation8 [shape = 's32[]', space=sflag, size = 0x4, offset = 0, fixed_abs, tag = 'sflag constant byte address 0x0 - dummy sync flag']
  #allocation9 [shape = 's32[]', space=sflag, size = 0x4, offset = 0, fixed_abs, tag = 'sflag constant byte address 0x0 - dummy sync flag']
  #allocation10 [shape = 'u32[]', space=smem, size = 0x4, offset = 0x44, fixed_abs, tag = 'smem constant byte address 0x44 - assertion arg 0']
  #allocation11 [shape = 'u32[]', space=smem, size = 0x4, offset = 0x48, fixed_abs, tag = 'smem constant byte address 0x48 - assertion arg 1']
  %s0 = inlined_call_operand.hbm [shape: bf16[2,18,24,128], index: 0, kind: input, shape index: {}]
  %s1 = inlined_call_operand.hbm [shape: bf16[1152,128], index: 1, kind: input, shape index: {}]
  %s2 = inlined_call_operand.vmem [shape: f32[1,128], index: 2, kind: input, shape index: {}]
  %s3 = inlined_call_operand.hbm [shape: f32[2,16,16,128], index: 3, kind: output, shape index: {}]
  %s4 = sld [smem:[#allocation0]]
  $region49: #{tpu_custom_call.1} parent=0
    _
  %s6 = ssub.s32 1, %s4
  %s7 = scalar_select 0, %s6, %s4
  $region1: #{tpu_custom_call.1} parent=0
    #allocation4 [shape = 'u8[294912]{0}', space=vmem, size = 0x48000, scoped, tag = 'input window, operand 1, single buffered']
    #allocation5 [shape = 's32[2]{0}', space=sflag, size = 0x8, scoped, tag = 'scoped memory for tpu_custom_call.1']
    #allocation6 [shape = 's32[2]{0}', space=sflag, size = 0x8, scoped, tag = 'scoped memory for tpu_custom_call.1']
    #allocation7 [shape = 'u8[131072]{0}', space=vmem, size = 0x20000, scoped, tag = 'output window, operand 0']
    %8 = vsyncpa [#allocation5], 0
    %9 = vsyncpa [#allocation6], 0
    %s10 = scalar_lea.sflag [#allocation6], 1
    %11 = vsyncpa %s10, 0
    loop: start=0, step=1, limit=6
    $region2: #{tpu_custom_call.1} parent=1 // loop_pre_header
      _
    $region3: #{tpu_custom_call.1} parent=1 // loop_header
      %s13 = sphi 0, %s17
      %p14 = scmp.ge.s32.totalorder %s13, 6
      %s20 = sphi 0, %s32
      %s21 = sphi 0, %s28
      %s22 = sphi 0, %s20
      %s23 = sphi 0, %s21
      %s24 = sphi 0, %s22
      %s25 = sphi 0, %s23
      %s33 = sphi 0, %s33
      %s35 = sphi 0, %s33
      %s36 = sphi 0, %s35
      %s50 = sphi 0, %s36
      %s54 = sphi 0, %s54
      %s56 = sphi 0, %s54
      %s57 = sphi 0, %s56
      %s71 = sphi 0, %s57
      %s79 = sphi 0, %s81
      %s82 = sphi 0, %s79
      %s83 = sphi 0, %s82
      %s99 = sphi 0, %s83
    $region4: #{tpu_custom_call.1} parent=1 // loop_header_branch
      %16 = sbr.rel (%p14) target = $region8
    $region5: #{tpu_custom_call.1} parent=1 // loop_body
      %s18 = ssub.s32 %s13, 1
      %s19 = ssub.s32 %s13, 2
      %s26 = sadd.s32 1, %s21
      %p27 = scmp.ge.s32.totalorder %s26, 2
      %s28 = scalar_select %p27, 0, %s26
      %s29 = sadd.s32 1, %s20
      %s30 = scalar_select %p27, %s29, %s20
      %p31 = scmp.ge.s32.totalorder %s30, 2
      %s32 = scalar_select %p31, 0, %s30
      %s34 = sadd.s32 %s33, 1
      %p37 = scmp.eq.s32.totalorder %s13, 3
      %p38 = scmp.ne.s32.totalorder %s33, %s35
      %p39 = scmp.eq.s32.totalorder %s13, 0
      %p40 = por %p38, %p39
      %p41 = scmp.ne.s32.totalorder %s33, %s35
      %p42 = scmp.eq.s32.totalorder %s18, 3
      %p43 = por %p41, %p42
      %p44 = scmp.ne.s32.totalorder %s35, %s36
      %p45 = scmp.eq.s32.totalorder %s18, 0
      %p46 = por %p44, %p45
      %p47 = scmp.ne.s32.totalorder %s35, %s36
      %p48 = scmp.eq.s32.totalorder %s19, 3
      %p49 = por %p47, %p48
      %p51 = scmp.ne.s32.totalorder %s36, %s50
      %p52 = scmp.eq.s32.totalorder %s19, 0
      %p53 = por %p51, %p52
      %s55 = sadd.s32 %s54, 1
      %p58 = scmp.eq.s32.totalorder %s13, 3
      %p59 = scmp.ne.s32.totalorder %s54, %s56
      %p60 = scmp.eq.s32.totalorder %s13, 0
      %p61 = por %p59, %p60
      %p62 = scmp.ne.s32.totalorder %s54, %s56
      %p63 = scmp.eq.s32.totalorder %s18, 3
      %p64 = por %p62, %p63
      %p65 = scmp.ne.s32.totalorder %s56, %s57
      %p66 = scmp.eq.s32.totalorder %s18, 0
      %p67 = por %p65, %p66
      %p68 = scmp.ne.s32.totalorder %s56, %s57
      %p69 = scmp.eq.s32.totalorder %s19, 3
      %p70 = por %p68, %p69
      %p72 = scmp.ne.s32.totalorder %s57, %s71
      %p73 = scmp.eq.s32.totalorder %s19, 0
      %p74 = por %p72, %p73
      %s75 = ssub.s32 %s20, %s32
      %s76 = ssub.s32 %s21, %s28
      %s77 = sor.u32 %s75, %s76
      %p78 = scmp.eq.s32.totalorder %s77, 0
      %s80 = sadd.s32 %s79, 1
      %s81 = scalar_select %p78, %s79, %s80
      %p84 = pneg %p78
      %p85 = scmp.eq.s32.totalorder %s13, 3
      %p86 = por %p84, %p85
      %p87 = scmp.ne.s32.totalorder %s79, %s82
      %p88 = scmp.eq.s32.totalorder %s13, 0
      %p89 = por %p87, %p88
      %p90 = scmp.ne.s32.totalorder %s79, %s82
      %p91 = scmp.eq.s32.totalorder %s18, 3
      %p92 = por %p90, %p91
      %p93 = scmp.ne.s32.totalorder %s82, %s83
      %p94 = scmp.eq.s32.totalorder %s18, 0
      %p95 = por %p93, %p94
      %p96 = scmp.ne.s32.totalorder %s82, %s83
      %p97 = scmp.eq.s32.totalorder %s19, 3
      %p98 = por %p96, %p97
      %p100 = scmp.ne.s32.totalorder %s83, %s99
      %p101 = scmp.eq.s32.totalorder %s19, 0
      %p102 = por %p100, %p101
      %p103 = scmp.le.s32.totalorder 1, %s13
      %p104 = scmp.lt.s32.totalorder %s13, 5
      %p105 = pnand %p103, %p104
      %p106 = pneg %p105
      // Predicated region
      $region9: #{tpu_custom_call.1} parent=5 // pred_check
        _
      $region10: #{tpu_custom_call.1} parent=5 // pred_check_branch
        %108 = sbr.rel (%p105) target = $region12
      $region11: #{tpu_custom_call.1} parent=5 // pred_region
        %s109 = ssub.s32 %s13, 1
        // Predicated region
        $region13: #{tpu_custom_call.1} parent=11 // pred_check
          %p110 = pneg %p46
        $region14: #{tpu_custom_call.1} parent=11 // pred_check_branch
          %112 = sbr.rel (%p110) target = $region16
        $region15: #{tpu_custom_call.1} parent=11 // pred_region
          %s114 = ssub.s32 9216, 9216
          %115 = vsyncadd [#allocation5], %s114
          %s116 = sshll.u32 [#allocation4], 4
          %s117 = int_to_ptr.vmem [resolvable:$true] %s116
          %122 = dma.hbm_to_vmem [thread:$0]  %s1, 9216, %s117, [#allocation5], 64, 64, 4
        $region16: #{tpu_custom_call.1} parent=11 // pred_fallthru
          _
        // Predicated region
        $region17: #{tpu_custom_call.1} parent=11 // pred_check
          %p123 = pneg %p67
        $region18: #{tpu_custom_call.1} parent=11 // pred_check_branch
          %125 = sbr.rel (%p123) target = $region20
        $region19: #{tpu_custom_call.1} parent=11 // pred_region
          _
        $region20: #{tpu_custom_call.1} parent=11 // pred_fallthru
          _
      $region12: #{tpu_custom_call.1} parent=5 // pred_fallthru
        _
      %p126 = scmp.lt.s32.totalorder %s13, 4
      // Predicated region
      $region21: #{tpu_custom_call.1} parent=5 // pred_check
        %p127 = pneg %p126
      $region22: #{tpu_custom_call.1} parent=5 // pred_check_branch
        %129 = sbr.rel (%p127) target = $region24
      $region23: #{tpu_custom_call.1} parent=5 // pred_region
        _
      $region24: #{tpu_custom_call.1} parent=5 // pred_fallthru
        _
      %p130 = scmp.le.s32.totalorder 1, %s13
      %p131 = scmp.lt.s32.totalorder %s13, 5
      %p132 = pnand %p130, %p131
      %p133 = pneg %p132
      // Predicated region
      $region25: #{tpu_custom_call.1} parent=5 // pred_check
        _
      $region26: #{tpu_custom_call.1} parent=5 // pred_check_branch
        %135 = sbr.rel (%p132) target = $region28
      $region27: #{tpu_custom_call.1} parent=5 // pred_region
        %s136 = ssub.s32 %s13, 1
        // Predicated region
        $region29: #{tpu_custom_call.1} parent=27 // pred_check
          %p137 = pneg %p46
        $region30: #{tpu_custom_call.1} parent=27 // pred_check_branch
          %139 = sbr.rel (%p137) target = $region32
        $region31: #{tpu_custom_call.1} parent=27 // pred_region
          %140 = dma.done [#allocation5], 9216
        $region32: #{tpu_custom_call.1} parent=27 // pred_fallthru
          _
        %p141 = pneg %p46
        %p142 = pneg %p43
        %p143 = pneg %p67
        %p144 = pneg %p64
        %p145 = pneg %p95
        %p146 = pneg %p92
        %s147 = sand.u32 %s82, 1
        %s148 = scalar_lea.sflag [#allocation6], %s147
        %s149 = sand.u32 %s82, 1
        %s150 = smul.addr %s149, 128
        %s151 = scalar_lea.vmem [#allocation7], %s150
        %s152 = smul.u32 8, %s23
        %s154 = smul.u32 %s23, 8
        %s155 = smul.u32 %s154, 3
        %s156 = smul.u32 %s22, 54
        %s157 = sadd.s32 %s155, %s156
        %s158 = smul.addr %s157, 64
        %s159 = scalar_lea.hbm %s0, %s158
        // Predicated region
        $region33: #{tpu_custom_call.1} parent=27 // pred_check
          _
        $region34: #{tpu_custom_call.1} parent=27 // pred_check_branch
          %161 = sbr.rel target = $region36
        $region35: #{tpu_custom_call.1} parent=27 // pred_region
          %162 = sst [smem:[#allocation10]] [#allocation9]
          %163 = sst [smem:[#allocation11]] [#allocation8]
        $region36: #{tpu_custom_call.1} parent=27 // pred_fallthru
          _
        %165 = shalt.err (0)
        %s167 = sshll.u32 [#allocation2], 4
        %s168 = int_to_ptr.vmem [resolvable:$true] %s167
        %170 = dma.hbm_to_vmem [thread:$0]  %s159, 1920, %s168, [#allocation3]
        %s171 = smul.u32 4, 10
        %s172 = smul.u32 %s171, 3
        %s173 = smul.u32 %s172, 1
        %s174 = sshll.u32 %s173, 4
        %175 = dma.done [#allocation3], %s174
        %v176 = vld [vmem:[#allocation2] sm:$0xf]
        %v177 = vld [vmem:[#allocation2 + $0x4] sm:$0xf]
        %v178 = vld [vmem:[#allocation2 + $0x8] sm:$0xf]
        %v179 = vld [vmem:[#allocation2 + $0xc] sm:$0xf]
        %v180 = vld [vmem:[#allocation2 + $0x10] sm:$0xf]
        %v181 = vld [vmem:[#allocation2 + $0x14] sm:$0xf]
        %v182 = vld [vmem:[#allocation2 + $0x18] sm:$0xf]
        %v183 = vld [vmem:[#allocation2 + $0x1c] sm:$0xf]
        %v184 = vld [vmem:[#allocation2 + $0x20] sm:$0xf]
        %v185 = vld [vmem:[#allocation2 + $0x24] sm:$0xf]
        %v186 = vld [vmem:[#allocation2 + $0x28] sm:$0xf]
        %v187 = vld [vmem:[#allocation2 + $0x2c] sm:$0xf]
        %v188 = vld [vmem:[#allocation2 + $0x30] sm:$0xf]
        %v189 = vld [vmem:[#allocation2 + $0x34] sm:$0xf]
        %v190 = vld [vmem:[#allocation2 + $0x38] sm:$0xf]
        %v191 = vld [vmem:[#allocation2 + $0x3c] sm:$0xf]
        %v192 = vld [vmem:[#allocation2 + $0x40] sm:$0xf]
        %v193 = vld [vmem:[#allocation2 + $0x44] sm:$0xf]
        %v194 = vld [vmem:[#allocation2 + $0x48] sm:$0xf]
        %v195 = vld [vmem:[#allocation2 + $0x4c] sm:$0xf]
        %v196 = vld [vmem:[#allocation2 + $0x50] sm:$0xf]
        %v197 = vld [vmem:[#allocation2 + $0x54] sm:$0xf]
        %v198 = vld [vmem:[#allocation2 + $0x58] sm:$0xf]
        %v199 = vld [vmem:[#allocation2 + $0x5c] sm:$0xf]
        %v200 = vld [vmem:[#allocation2 + $0x60] sm:$0xf]
        %v201 = vld [vmem:[#allocation2 + $0x64] sm:$0xf]
        %v202 = vld [vmem:[#allocation2 + $0x68] sm:$0xf]
        %v203 = vld [vmem:[#allocation2 + $0x6c] sm:$0xf]
        %v204 = vld [vmem:[#allocation2 + $0x70] sm:$0xf]
        %v205 = vld [vmem:[#allocation2 + $0x74] sm:$0xf]
        %vm206 = vsmask.f32 3328
        %vm207 = vsmask.f32 7440
        %vm208 = vmor %vm206, %vm207
        %v210 = vshrl.u32 %v176, 16
        %v212 = vrot.slane %v210, 4
        %v213 = vshll.u32 %v176, 16
        %v215 = vrot.slane %v213, 5
        %v216 = vor.u32 %v212, %v215
        %v217 = vrot.slane %v216, 4
        %v219 = vshll.u32 %v177, 16
        %v221 = vrot.slane %v219, 5
        %v222 = vsel %vm208, %v217, %v221
        %v223 = vshrl.u32 %v177, 16
        %v225 = vrot.slane %v223, 4
        %v226 = vor.u32 %v225, %v221
        %v227 = vrot.slane %v226, 4
        %v229 = vshll.u32 %v178, 16
        %v231 = vrot.slane %v229, 5
        %v232 = vsel %vm208, %v227, %v231
        %v234 = vshrl.u32 %v179, 16
        %v236 = vrot.slane %v234, 4
        %v237 = vshll.u32 %v179, 16
        %v239 = vrot.slane %v237, 5
        %v240 = vor.u32 %v236, %v239
        %v241 = vrot.slane %v240, 4
        %v243 = vshll.u32 %v180, 16
        %v245 = vrot.slane %v243, 5
        %v246 = vsel %vm208, %v241, %v245
        %v247 = vshrl.u32 %v180, 16
        %v249 = vrot.slane %v247, 4
        %v250 = vor.u32 %v249, %v245
        %v251 = vrot.slane %v250, 4
        %v253 = vshll.u32 %v181, 16
        %v255 = vrot.slane %v253, 5
        %v256 = vsel %vm208, %v251, %v255
        %v258 = vshrl.u32 %v182, 16
        %v260 = vrot.slane %v258, 4
        %v261 = vshll.u32 %v182, 16
        %v263 = vrot.slane %v261, 5
        %v264 = vor.u32 %v260, %v263
        %v265 = vrot.slane %v264, 4
        %v267 = vshll.u32 %v183, 16
        %v269 = vrot.slane %v267, 5
        %v270 = vsel %vm208, %v265, %v269
        %v271 = vshrl.u32 %v183, 16
        %v273 = vrot.slane %v271, 4
        %v274 = vor.u32 %v273, %v269
        %v275 = vrot.slane %v274, 4
        %v277 = vshll.u32 %v184, 16
        %v279 = vrot.slane %v277, 5
        %v280 = vsel %vm208, %v275, %v279
        %v282 = vshrl.u32 %v185, 16
        %v284 = vrot.slane %v282, 4
        %v285 = vshll.u32 %v185, 16
        %v287 = vrot.slane %v285, 5
        %v288 = vor.u32 %v284, %v287
        %v289 = vrot.slane %v288, 4
        %v291 = vshll.u32 %v186, 16
        %v293 = vrot.slane %v291, 5
        %v294 = vsel %vm208, %v289, %v293
        %v295 = vshrl.u32 %v186, 16
        %v297 = vrot.slane %v295, 4
        %v298 = vor.u32 %v297, %v293
        %v299 = vrot.slane %v298, 4
        %v301 = vshll.u32 %v187, 16
        %v303 = vrot.slane %v301, 5
        %v304 = vsel %vm208, %v299, %v303
        %v306 = vshrl.u32 %v188, 16
        %v308 = vrot.slane %v306, 4
        %v309 = vshll.u32 %v188, 16
        %v311 = vrot.slane %v309, 5
        %v312 = vor.u32 %v308, %v311
        %v313 = vrot.slane %v312, 4
        %v315 = vshll.u32 %v189, 16
        %v317 = vrot.slane %v315, 5
        %v318 = vsel %vm208, %v313, %v317
        %v319 = vshrl.u32 %v189, 16
        %v321 = vrot.slane %v319, 4
        %v322 = vor.u32 %v321, %v317
        %v323 = vrot.slane %v322, 4
        %v325 = vshll.u32 %v190, 16
        %v327 = vrot.slane %v325, 5
        %v328 = vsel %vm208, %v323, %v327
        %v330 = vshrl.u32 %v191, 16
        %v332 = vrot.slane %v330, 4
        %v333 = vshll.u32 %v191, 16
        %v335 = vrot.slane %v333, 5
        %v336 = vor.u32 %v332, %v335
        %v337 = vrot.slane %v336, 4
        %v339 = vshll.u32 %v192, 16
        %v341 = vrot.slane %v339, 5
        %v342 = vsel %vm208, %v337, %v341
        %v343 = vshrl.u32 %v192, 16
        %v345 = vrot.slane %v343, 4
        %v346 = vor.u32 %v345, %v341
        %v347 = vrot.slane %v346, 4
        %v349 = vshll.u32 %v193, 16
        %v351 = vrot.slane %v349, 5
        %v352 = vsel %vm208, %v347, %v351
        %v354 = vshrl.u32 %v194, 16
        %v356 = vrot.slane %v354, 4
        %v357 = vshll.u32 %v194, 16
        %v359 = vrot.slane %v357, 5
        %v360 = vor.u32 %v356, %v359
        %v361 = vrot.slane %v360, 4
        %v363 = vshll.u32 %v195, 16
        %v365 = vrot.slane %v363, 5
        %v366 = vsel %vm208, %v361, %v365
        %v367 = vshrl.u32 %v195, 16
        %v369 = vrot.slane %v367, 4
        %v370 = vor.u32 %v369, %v365
        %v371 = vrot.slane %v370, 4
        %v373 = vshll.u32 %v196, 16
        %v375 = vrot.slane %v373, 5
        %v376 = vsel %vm208, %v371, %v375
        %v378 = vshrl.u32 %v197, 16
        %v380 = vrot.slane %v378, 4
        %v381 = vshll.u32 %v197, 16
        %v383 = vrot.slane %v381, 5
        %v384 = vor.u32 %v380, %v383
        %v385 = vrot.slane %v384, 4
        %v387 = vshll.u32 %v198, 16
        %v389 = vrot.slane %v387, 5
        %v390 = vsel %vm208, %v385, %v389
        %v391 = vshrl.u32 %v198, 16
        %v393 = vrot.slane %v391, 4
        %v394 = vor.u32 %v393, %v389
        %v395 = vrot.slane %v394, 4
        %v397 = vshll.u32 %v199, 16
        %v399 = vrot.slane %v397, 5
        %v400 = vsel %vm208, %v395, %v399
        %vm425 = vcmask 1042432
        %vm426 = vcmask 1046532
        %vm427 = vmor %vm425, %vm426
        %v428 = vrot.slane %v176, 5
        %v429 = vrot.slane %v428, 4
        %v430 = vrot.slane %v177, 5
        %v431 = vsel %vm427, %v429, %v430
        %v432 = vrot.slane %v430, 4
        %v433 = vrot.slane %v178, 5
        %v434 = vsel %vm427, %v432, %v433
        %v435 = vrot.slane %v179, 5
        %v436 = vrot.slane %v435, 4
        %v437 = vrot.slane %v180, 5
        %v438 = vsel %vm427, %v436, %v437
        %v439 = vrot.slane %v437, 4
        %v440 = vrot.slane %v181, 5
        %v441 = vsel %vm427, %v439, %v440
        %v442 = vrot.slane %v182, 5
        %v443 = vrot.slane %v442, 4
        %v444 = vrot.slane %v183, 5
        %v445 = vsel %vm427, %v443, %v444
        %v446 = vrot.slane %v444, 4
        %v447 = vrot.slane %v184, 5
        %v448 = vsel %vm427, %v446, %v447
        %v449 = vrot.slane %v185, 5
        %v450 = vrot.slane %v449, 4
        %v451 = vrot.slane %v186, 5
        %v452 = vsel %vm427, %v450, %v451
        %v453 = vrot.slane %v451, 4
        %v454 = vrot.slane %v187, 5
        %v455 = vsel %vm427, %v453, %v454
        %v456 = vrot.slane %v188, 5
        %v457 = vrot.slane %v456, 4
        %v458 = vrot.slane %v189, 5
        %v459 = vsel %vm427, %v457, %v458
        %v460 = vrot.slane %v458, 4
        %v461 = vrot.slane %v190, 5
        %v462 = vsel %vm427, %v460, %v461
        %v463 = vrot.slane %v191, 5
        %v464 = vrot.slane %v463, 4
        %v465 = vrot.slane %v192, 5
        %v466 = vsel %vm427, %v464, %v465
        %v467 = vrot.slane %v465, 4
        %v468 = vrot.slane %v193, 5
        %v469 = vsel %vm427, %v467, %v468
        %v470 = vrot.slane %v194, 5
        %v471 = vrot.slane %v470, 4
        %v472 = vrot.slane %v195, 5
        %v473 = vsel %vm427, %v471, %v472
        %v474 = vrot.slane %v472, 4
        %v475 = vrot.slane %v196, 5
        %v476 = vsel %vm427, %v474, %v475
        %v477 = vrot.slane %v197, 5
        %v478 = vrot.slane %v477, 4
        %v479 = vrot.slane %v198, 5
        %v480 = vsel %vm427, %v478, %v479
        %v481 = vrot.slane %v479, 4
        %v482 = vrot.slane %v199, 5
        %v483 = vsel %vm427, %v481, %v482
        %v485 = vshrl.u32 %v200, 16
        %v487 = vrot.slane %v485, 4
        %v488 = vshll.u32 %v200, 16
        %v490 = vrot.slane %v488, 5
        %v491 = vor.u32 %v487, %v490
        %v492 = vrot.slane %v491, 4
        %v494 = vshll.u32 %v201, 16
        %v496 = vrot.slane %v494, 5
        %v497 = vsel %vm208, %v492, %v496
        %v498 = vshrl.u32 %v201, 16
        %v500 = vrot.slane %v498, 4
        %v501 = vor.u32 %v500, %v496
        %v502 = vrot.slane %v501, 4
        %v504 = vshll.u32 %v202, 16
        %v506 = vrot.slane %v504, 5
        %v507 = vsel %vm208, %v502, %v506
        %v511 = vrot.slane %v200, 5
        %v512 = vrot.slane %v511, 4
        %v513 = vrot.slane %v201, 5
        %v514 = vsel %vm427, %v512, %v513
        %v515 = vrot.slane %v513, 4
        %v516 = vrot.slane %v202, 5
        %v517 = vsel %vm427, %v515, %v516
        %v519 = vshrl.u32 %v203, 16
        %v521 = vrot.slane %v519, 4
        %v522 = vshll.u32 %v203, 16
        %v524 = vrot.slane %v522, 5
        %v525 = vor.u32 %v521, %v524
        %v526 = vrot.slane %v525, 4
        %v528 = vshll.u32 %v204, 16
        %v530 = vrot.slane %v528, 5
        %v531 = vsel %vm208, %v526, %v530
        %v532 = vshrl.u32 %v204, 16
        %v534 = vrot.slane %v532, 4
        %v535 = vor.u32 %v534, %v530
        %v536 = vrot.slane %v535, 4
        %v538 = vshll.u32 %v205, 16
        %v540 = vrot.slane %v538, 5
        %v541 = vsel %vm208, %v536, %v540
        %v545 = vrot.slane %v203, 5
        %v546 = vrot.slane %v545, 4
        %v547 = vrot.slane %v204, 5
        %v548 = vsel %vm427, %v546, %v547
        %v549 = vrot.slane %v547, 4
        %v550 = vrot.slane %v205, 5
        %v551 = vsel %vm427, %v549, %v550
        %v552 = vunpack.c.l.b16 %v176
        %v553 = vunpack.c.l.b16 %v177
        %v554 = vunpack.c.l.b16 %v179
        %v555 = vunpack.c.l.b16 %v180
        %v556 = vunpack.c.l.b16 %v182
        %v557 = vunpack.c.l.b16 %v183
        %v558 = vunpack.c.l.b16 %v185
        %v559 = vunpack.c.l.b16 %v186
        %v560 = vunpack.c.l.b16 %v188
        %v561 = vunpack.c.l.b16 %v189
        %v562 = vunpack.c.l.b16 %v191
        %v563 = vunpack.c.l.b16 %v192
        %v564 = vunpack.c.l.b16 %v194
        %v565 = vunpack.c.l.b16 %v195
        %v566 = vunpack.c.l.b16 %v197
        %v567 = vunpack.c.l.b16 %v198
        %v568 = vpack.c.b16 %v553, %v552
        %v569 = vpack.c.b16 %v555, %v554
        %v570 = vpack.c.b16 %v557, %v556
        %v571 = vpack.c.b16 %v559, %v558
        %v572 = vpack.c.b16 %v561, %v560
        %v573 = vpack.c.b16 %v563, %v562
        %v574 = vpack.c.b16 %v565, %v564
        %v575 = vpack.c.b16 %v567, %v566
        %v584 = vunpack.c.l.b16 %v222
        %v585 = vunpack.c.l.b16 %v232
        %v586 = vunpack.c.l.b16 %v246
        %v587 = vunpack.c.l.b16 %v256
        %v588 = vunpack.c.l.b16 %v270
        %v589 = vunpack.c.l.b16 %v280
        %v590 = vunpack.c.l.b16 %v294
        %v591 = vunpack.c.l.b16 %v304
        %v592 = vunpack.c.l.b16 %v318
        %v593 = vunpack.c.l.b16 %v328
        %v594 = vunpack.c.l.b16 %v342
        %v595 = vunpack.c.l.b16 %v352
        %v596 = vunpack.c.l.b16 %v366
        %v597 = vunpack.c.l.b16 %v376
        %v598 = vunpack.c.l.b16 %v390
        %v599 = vunpack.c.l.b16 %v400
        %v600 = vpack.c.b16 %v585, %v584
        %v601 = vpack.c.b16 %v587, %v586
        %v602 = vpack.c.b16 %v589, %v588
        %v603 = vpack.c.b16 %v591, %v590
        %v604 = vpack.c.b16 %v593, %v592
        %v605 = vpack.c.b16 %v595, %v594
        %v606 = vpack.c.b16 %v597, %v596
        %v607 = vpack.c.b16 %v599, %v598
        %v616 = vunpack.c.l.b16 %v431
        %v617 = vunpack.c.l.b16 %v434
        %v618 = vunpack.c.l.b16 %v438
        %v619 = vunpack.c.l.b16 %v441
        %v620 = vunpack.c.l.b16 %v445
        %v621 = vunpack.c.l.b16 %v448
        %v622 = vunpack.c.l.b16 %v452
        %v623 = vunpack.c.l.b16 %v455
        %v624 = vunpack.c.l.b16 %v459
        %v625 = vunpack.c.l.b16 %v462
        %v626 = vunpack.c.l.b16 %v466
        %v627 = vunpack.c.l.b16 %v469
        %v628 = vunpack.c.l.b16 %v473
        %v629 = vunpack.c.l.b16 %v476
        %v630 = vunpack.c.l.b16 %v480
        %v631 = vunpack.c.l.b16 %v483
        %v632 = vpack.c.b16 %v617, %v616
        %v633 = vpack.c.b16 %v619, %v618
        %v634 = vpack.c.b16 %v621, %v620
        %v635 = vpack.c.b16 %v623, %v622
        %v636 = vpack.c.b16 %v625, %v624
        %v637 = vpack.c.b16 %v627, %v626
        %v638 = vpack.c.b16 %v629, %v628
        %v639 = vpack.c.b16 %v631, %v630
        %v648 = vunpack.c.l.b16 %v200
        %v649 = vunpack.c.l.b16 %v201
        %v650 = vpack.c.b16 %v649, %v648
        %v652 = vunpack.c.l.b16 %v497
        %v653 = vunpack.c.l.b16 %v507
        %v654 = vpack.c.b16 %v653, %v652
        %v656 = vunpack.c.l.b16 %v514
        %v657 = vunpack.c.l.b16 %v517
        %v658 = vpack.c.b16 %v657, %v656
        %v660 = vunpack.c.l.b16 %v203
        %v661 = vunpack.c.l.b16 %v204
        %v662 = vpack.c.b16 %v661, %v660
        %v664 = vunpack.c.l.b16 %v531
        %v665 = vunpack.c.l.b16 %v541
        %v666 = vpack.c.b16 %v665, %v664
        %v668 = vunpack.c.l.b16 %v548
        %v669 = vunpack.c.l.b16 %v551
        %v670 = vpack.c.b16 %v669, %v668
        %v672 = vld [vmem:[#allocation4] sm:$0xf]
        %v673 = vld [vmem:[#allocation4 + $0x4] sm:$0xf]
        %v674 = vld [vmem:[#allocation4 + $0x8] sm:$0xf]
        %v675 = vld [vmem:[#allocation4 + $0xc] sm:$0xf]
        %v676 = vld [vmem:[#allocation4 + $0x10] sm:$0xf]
        %v677 = vld [vmem:[#allocation4 + $0x14] sm:$0xf]
        %v678 = vld [vmem:[#allocation4 + $0x18] sm:$0xf]
        %v679 = vld [vmem:[#allocation4 + $0x1c] sm:$0xf]
        %v680 = vld [vmem:[#allocation4 + $0x20] sm:$0xf]
        %v681 = vld [vmem:[#allocation4 + $0x24] sm:$0xf]
        %v682 = vld [vmem:[#allocation4 + $0x28] sm:$0xf]
        %v683 = vld [vmem:[#allocation4 + $0x2c] sm:$0xf]
        %v684 = vld [vmem:[#allocation4 + $0x30] sm:$0xf]
        %v685 = vld [vmem:[#allocation4 + $0x34] sm:$0xf]
        %v686 = vld [vmem:[#allocation4 + $0x38] sm:$0xf]
        %v687 = vld [vmem:[#allocation4 + $0x3c] sm:$0xf]
        %v688 = vld [vmem:[#allocation4 + $0x40] sm:$0xf]
        %v689 = vld [vmem:[#allocation4 + $0x44] sm:$0xf]
        %v690 = vld [vmem:[#allocation4 + $0x48] sm:$0xf]
        %v691 = vld [vmem:[#allocation4 + $0x4c] sm:$0xf]
        %v692 = vld [vmem:[#allocation4 + $0x50] sm:$0xf]
        %v693 = vld [vmem:[#allocation4 + $0x54] sm:$0xf]
        %v694 = vld [vmem:[#allocation4 + $0x58] sm:$0xf]
        %v695 = vld [vmem:[#allocation4 + $0x5c] sm:$0xf]
        %v696 = vld [vmem:[#allocation4 + $0x60] sm:$0xf]
        %v697 = vld [vmem:[#allocation4 + $0x64] sm:$0xf]
        %v698 = vld [vmem:[#allocation4 + $0x68] sm:$0xf]
        %v699 = vld [vmem:[#allocation4 + $0x6c] sm:$0xf]
        %v700 = vld [vmem:[#allocation4 + $0x70] sm:$0xf]
        %v701 = vld [vmem:[#allocation4 + $0x74] sm:$0xf]
        %v702 = vld [vmem:[#allocation4 + $0x78] sm:$0xf]
        %v703 = vld [vmem:[#allocation4 + $0x7c] sm:$0xf]
        %v704 = vld [vmem:[#allocation4 + $0x80] sm:$0xf]
        %v705 = vld [vmem:[#allocation4 + $0x84] sm:$0xf]
        %v706 = vld [vmem:[#allocation4 + $0x88] sm:$0xf]
        %v707 = vld [vmem:[#allocation4 + $0x8c] sm:$0xf]
        %v708 = vld [vmem:[#allocation4 + $0x90] sm:$0xf]
        %v709 = vld [vmem:[#allocation4 + $0x94] sm:$0xf]
        %v710 = vld [vmem:[#allocation4 + $0x98] sm:$0xf]
        %v711 = vld [vmem:[#allocation4 + $0x9c] sm:$0xf]
        %v712 = vld [vmem:[#allocation4 + $0xa0] sm:$0xf]
        %v713 = vld [vmem:[#allocation4 + $0xa4] sm:$0xf]
        %v714 = vld [vmem:[#allocation4 + $0xa8] sm:$0xf]
        %v715 = vld [vmem:[#allocation4 + $0xac] sm:$0xf]
        %v716 = vld [vmem:[#allocation4 + $0xb0] sm:$0xf]
        %v717 = vld [vmem:[#allocation4 + $0xb4] sm:$0xf]
        %v718 = vld [vmem:[#allocation4 + $0xb8] sm:$0xf]
        %v719 = vld [vmem:[#allocation4 + $0xbc] sm:$0xf]
        %v720 = vld [vmem:[#allocation4 + $0xc0] sm:$0xf]
        %v721 = vld [vmem:[#allocation4 + $0xc4] sm:$0xf]
        %v722 = vld [vmem:[#allocation4 + $0xc8] sm:$0xf]
        %v723 = vld [vmem:[#allocation4 + $0xcc] sm:$0xf]
        %v724 = vld [vmem:[#allocation4 + $0xd0] sm:$0xf]
        %v725 = vld [vmem:[#allocation4 + $0xd4] sm:$0xf]
        %v726 = vld [vmem:[#allocation4 + $0xd8] sm:$0xf]
        %v727 = vld [vmem:[#allocation4 + $0xdc] sm:$0xf]
        %v728 = vld [vmem:[#allocation4 + $0xe0] sm:$0xf]
        %v729 = vld [vmem:[#allocation4 + $0xe4] sm:$0xf]
        %v730 = vld [vmem:[#allocation4 + $0xe8] sm:$0xf]
        %v731 = vld [vmem:[#allocation4 + $0xec] sm:$0xf]
        %v732 = vld [vmem:[#allocation4 + $0xf0] sm:$0xf]
        %v733 = vld [vmem:[#allocation4 + $0xf4] sm:$0xf]
        %v734 = vld [vmem:[#allocation4 + $0xf8] sm:$0xf]
        %v735 = vld [vmem:[#allocation4 + $0xfc] sm:$0xf]
        %v736 = vld [vmem:[#allocation4 + $0x100] sm:$0xf]
        %v737 = vld [vmem:[#allocation4 + $0x104] sm:$0xf]
        %v738 = vld [vmem:[#allocation4 + $0x108] sm:$0xf]
        %v739 = vld [vmem:[#allocation4 + $0x10c] sm:$0xf]
        %v740 = vld [vmem:[#allocation4 + $0x110] sm:$0xf]
        %v741 = vld [vmem:[#allocation4 + $0x114] sm:$0xf]
        %v742 = vld [vmem:[#allocation4 + $0x118] sm:$0xf]
        %v743 = vld [vmem:[#allocation4 + $0x11c] sm:$0xf]
        %v744 = vld [vmem:[#allocation4 + $0x120] sm:$0xf]
        %v745 = vld [vmem:[#allocation4 + $0x124] sm:$0xf]
        %v746 = vld [vmem:[#allocation4 + $0x128] sm:$0xf]
        %v747 = vld [vmem:[#allocation4 + $0x12c] sm:$0xf]
        %v748 = vld [vmem:[#allocation4 + $0x130] sm:$0xf]
        %v749 = vld [vmem:[#allocation4 + $0x134] sm:$0xf]
        %v750 = vld [vmem:[#allocation4 + $0x138] sm:$0xf]
        %v751 = vld [vmem:[#allocation4 + $0x13c] sm:$0xf]
        %v752 = vld [vmem:[#allocation4 + $0x140] sm:$0xf]
        %v753 = vld [vmem:[#allocation4 + $0x144] sm:$0xf]
        %v754 = vld [vmem:[#allocation4 + $0x148] sm:$0xf]
        %v755 = vld [vmem:[#allocation4 + $0x14c] sm:$0xf]
        %v756 = vld [vmem:[#allocation4 + $0x150] sm:$0xf]
        %v757 = vld [vmem:[#allocation4 + $0x154] sm:$0xf]
        %v758 = vld [vmem:[#allocation4 + $0x158] sm:$0xf]
        %v759 = vld [vmem:[#allocation4 + $0x15c] sm:$0xf]
        %v760 = vld [vmem:[#allocation4 + $0x160] sm:$0xf]
        %v761 = vld [vmem:[#allocation4 + $0x164] sm:$0xf]
        %v762 = vld [vmem:[#allocation4 + $0x168] sm:$0xf]
        %v763 = vld [vmem:[#allocation4 + $0x16c] sm:$0xf]
        %v764 = vld [vmem:[#allocation4 + $0x170] sm:$0xf]
        %v765 = vld [vmem:[#allocation4 + $0x174] sm:$0xf]
        %v766 = vld [vmem:[#allocation4 + $0x178] sm:$0xf]
        %v767 = vld [vmem:[#allocation4 + $0x17c] sm:$0xf]
        %v768 = vld [vmem:[#allocation4 + $0x180] sm:$0xf]
        %v769 = vld [vmem:[#allocation4 + $0x184] sm:$0xf]
        %v770 = vld [vmem:[#allocation4 + $0x188] sm:$0xf]
        %v771 = vld [vmem:[#allocation4 + $0x18c] sm:$0xf]
        %v772 = vld [vmem:[#allocation4 + $0x190] sm:$0xf]
        %v773 = vld [vmem:[#allocation4 + $0x194] sm:$0xf]
        %v774 = vld [vmem:[#allocation4 + $0x198] sm:$0xf]
        %v775 = vld [vmem:[#allocation4 + $0x19c] sm:$0xf]
        %v776 = vld [vmem:[#allocation4 + $0x1a0] sm:$0xf]
        %v777 = vld [vmem:[#allocation4 + $0x1a4] sm:$0xf]
        %v778 = vld [vmem:[#allocation4 + $0x1a8] sm:$0xf]
        %v779 = vld [vmem:[#allocation4 + $0x1ac] sm:$0xf]
        %v780 = vld [vmem:[#allocation4 + $0x1b0] sm:$0xf]
        %v781 = vld [vmem:[#allocation4 + $0x1b4] sm:$0xf]
        %v782 = vld [vmem:[#allocation4 + $0x1b8] sm:$0xf]
        %v783 = vld [vmem:[#allocation4 + $0x1bc] sm:$0xf]
        %v784 = vld [vmem:[#allocation4 + $0x1c0] sm:$0xf]
        %v785 = vld [vmem:[#allocation4 + $0x1c4] sm:$0xf]
        %v786 = vld [vmem:[#allocation4 + $0x1c8] sm:$0xf]
        %v787 = vld [vmem:[#allocation4 + $0x1cc] sm:$0xf]
        %v788 = vld [vmem:[#allocation4 + $0x1d0] sm:$0xf]
        %v789 = vld [vmem:[#allocation4 + $0x1d4] sm:$0xf]
        %v790 = vld [vmem:[#allocation4 + $0x1d8] sm:$0xf]
        %v791 = vld [vmem:[#allocation4 + $0x1dc] sm:$0xf]
        %v792 = vld [vmem:[#allocation4 + $0x1e0] sm:$0xf]
        %v793 = vld [vmem:[#allocation4 + $0x1e4] sm:$0xf]
        %v794 = vld [vmem:[#allocation4 + $0x1e8] sm:$0xf]
        %v795 = vld [vmem:[#allocation4 + $0x1ec] sm:$0xf]
        %v796 = vld [vmem:[#allocation4 + $0x1f0] sm:$0xf]
        %v797 = vld [vmem:[#allocation4 + $0x1f4] sm:$0xf]
        %v798 = vld [vmem:[#allocation4 + $0x1f8] sm:$0xf]
        %v799 = vld [vmem:[#allocation4 + $0x1fc] sm:$0xf]
        %v800 = vld [vmem:[#allocation4 + $0x200] sm:$0xf]
        %v801 = vld [vmem:[#allocation4 + $0x204] sm:$0xf]
        %v802 = vld [vmem:[#allocation4 + $0x208] sm:$0xf]
        %v803 = vld [vmem:[#allocation4 + $0x20c] sm:$0xf]
        %v804 = vld [vmem:[#allocation4 + $0x210] sm:$0xf]
        %v805 = vld [vmem:[#allocation4 + $0x214] sm:$0xf]
        %v806 = vld [vmem:[#allocation4 + $0x218] sm:$0xf]
        %v807 = vld [vmem:[#allocation4 + $0x21c] sm:$0xf]
        %v808 = vld [vmem:[#allocation4 + $0x220] sm:$0xf]
        %v809 = vld [vmem:[#allocation4 + $0x224] sm:$0xf]
        %v810 = vld [vmem:[#allocation4 + $0x228] sm:$0xf]
        %v811 = vld [vmem:[#allocation4 + $0x22c] sm:$0xf]
        %v812 = vld [vmem:[#allocation4 + $0x230] sm:$0xf]
        %v813 = vld [vmem:[#allocation4 + $0x234] sm:$0xf]
        %v814 = vld [vmem:[#allocation4 + $0x238] sm:$0xf]
        %v815 = vld [vmem:[#allocation4 + $0x23c] sm:$0xf]
        %v816 = vld [vmem:[%s2] sm:$0x1]
        %v818 = vlaneseq
        %v819 = vshrl.u32 %v818, 7
        %v820 = vsub.s32 0, %v819
        %v821 = vrot.slane %v816, %v820
        %v967 = vunpack.c.l.b16 %v672
        %v968 = vunpack.c.l.b16 %v673
        %v969 = vunpack.c.l.b16 %v674
        %v970 = vunpack.c.l.b16 %v675
        %v971 = vunpack.c.l.b16 %v676
        %v972 = vunpack.c.l.b16 %v677
        %v973 = vunpack.c.l.b16 %v678
        %v974 = vunpack.c.l.b16 %v679
        %v975 = vunpack.c.l.b16 %v680
        %v976 = vunpack.c.l.b16 %v681
        %v977 = vunpack.c.l.b16 %v682
        %v978 = vunpack.c.l.b16 %v683
        %v979 = vunpack.c.l.b16 %v684
        %v980 = vunpack.c.l.b16 %v685
        %v981 = vunpack.c.l.b16 %v686
        %v982 = vunpack.c.l.b16 %v687
        %v983 = vunpack.c.l.b16 %v688
        %v984 = vunpack.c.l.b16 %v689
        %v985 = vunpack.c.l.b16 %v690
        %v986 = vunpack.c.l.b16 %v691
        %v987 = vunpack.c.l.b16 %v692
        %v988 = vunpack.c.l.b16 %v693
        %v989 = vunpack.c.l.b16 %v694
        %v990 = vunpack.c.l.b16 %v695
        %v991 = vunpack.c.l.b16 %v696
        %v992 = vunpack.c.l.b16 %v697
        %v993 = vunpack.c.l.b16 %v698
        %v994 = vunpack.c.l.b16 %v699
        %v995 = vunpack.c.l.b16 %v700
        %v996 = vunpack.c.l.b16 %v701
        %v997 = vunpack.c.l.b16 %v702
        %v998 = vunpack.c.l.b16 %v703
        %v999 = vunpack.c.l.b16 %v704
        %v1000 = vunpack.c.l.b16 %v705
        %v1001 = vunpack.c.l.b16 %v706
        %v1002 = vunpack.c.l.b16 %v707
        %v1003 = vunpack.c.l.b16 %v708
        %v1004 = vunpack.c.l.b16 %v709
        %v1005 = vunpack.c.l.b16 %v710
        %v1006 = vunpack.c.l.b16 %v711
        %v1007 = vunpack.c.l.b16 %v712
        %v1008 = vunpack.c.l.b16 %v713
        %v1009 = vunpack.c.l.b16 %v714
        %v1010 = vunpack.c.l.b16 %v715
        %v1011 = vunpack.c.l.b16 %v716
        %v1012 = vunpack.c.l.b16 %v717
        %v1013 = vunpack.c.l.b16 %v718
        %v1014 = vunpack.c.l.b16 %v719
        %v1015 = vunpack.c.l.b16 %v720
        %v1016 = vunpack.c.l.b16 %v721
        %v1017 = vunpack.c.l.b16 %v722
        %v1018 = vunpack.c.l.b16 %v723
        %v1019 = vunpack.c.l.b16 %v724
        %v1020 = vunpack.c.l.b16 %v725
        %v1021 = vunpack.c.l.b16 %v726
        %v1022 = vunpack.c.l.b16 %v727
        %v1023 = vunpack.c.l.b16 %v728
        %v1024 = vunpack.c.l.b16 %v729
        %v1025 = vunpack.c.l.b16 %v730
        %v1026 = vunpack.c.l.b16 %v731
        %v1027 = vunpack.c.l.b16 %v732
        %v1028 = vunpack.c.l.b16 %v733
        %v1029 = vunpack.c.l.b16 %v734
        %v1030 = vunpack.c.l.b16 %v735
        %v1031 = vunpack.c.l.b16 %v736
        %v1032 = vunpack.c.l.b16 %v737
        %v1033 = vunpack.c.l.b16 %v738
        %v1034 = vunpack.c.l.b16 %v739
        %v1035 = vunpack.c.l.b16 %v740
        %v1036 = vunpack.c.l.b16 %v741
        %v1037 = vunpack.c.l.b16 %v742
        %v1038 = vunpack.c.l.b16 %v743
        %v1039 = vunpack.c.l.b16 %v744
        %v1040 = vunpack.c.l.b16 %v745
        %v1041 = vunpack.c.l.b16 %v746
        %v1042 = vunpack.c.l.b16 %v747
        %v1043 = vunpack.c.l.b16 %v748
        %v1044 = vunpack.c.l.b16 %v749
        %v1045 = vunpack.c.l.b16 %v750
        %v1046 = vunpack.c.l.b16 %v751
        %v1047 = vunpack.c.l.b16 %v752
        %v1048 = vunpack.c.l.b16 %v753
        %v1049 = vunpack.c.l.b16 %v754
        %v1050 = vunpack.c.l.b16 %v755
        %v1051 = vunpack.c.l.b16 %v756
        %v1052 = vunpack.c.l.b16 %v757
        %v1053 = vunpack.c.l.b16 %v758
        %v1054 = vunpack.c.l.b16 %v759
        %v1055 = vunpack.c.l.b16 %v760
        %v1056 = vunpack.c.l.b16 %v761
        %v1057 = vunpack.c.l.b16 %v762
        %v1058 = vunpack.c.l.b16 %v763
        %v1059 = vunpack.c.l.b16 %v764
        %v1060 = vunpack.c.l.b16 %v765
        %v1061 = vunpack.c.l.b16 %v766
        %v1062 = vunpack.c.l.b16 %v767
        %v1063 = vunpack.c.l.b16 %v768
        %v1064 = vunpack.c.l.b16 %v769
        %v1065 = vunpack.c.l.b16 %v770
        %v1066 = vunpack.c.l.b16 %v771
        %v1067 = vunpack.c.l.b16 %v772
        %v1068 = vunpack.c.l.b16 %v773
        %v1069 = vunpack.c.l.b16 %v774
        %v1070 = vunpack.c.l.b16 %v775
        %v1071 = vunpack.c.l.b16 %v776
        %v1072 = vunpack.c.l.b16 %v777
        %v1073 = vunpack.c.l.b16 %v778
        %v1074 = vunpack.c.l.b16 %v779
        %v1075 = vunpack.c.l.b16 %v780
        %v1076 = vunpack.c.l.b16 %v781
        %v1077 = vunpack.c.l.b16 %v782
        %v1078 = vunpack.c.l.b16 %v783
        %v1079 = vunpack.c.l.b16 %v784
        %v1080 = vunpack.c.l.b16 %v785
        %v1081 = vunpack.c.l.b16 %v786
        %v1082 = vunpack.c.l.b16 %v787
        %v1083 = vunpack.c.l.b16 %v788
        %v1084 = vunpack.c.l.b16 %v789
        %v1085 = vunpack.c.l.b16 %v790
        %v1086 = vunpack.c.l.b16 %v791
        %v1087 = vunpack.c.l.b16 %v792
        %v1088 = vunpack.c.l.b16 %v793
        %v1089 = vunpack.c.l.b16 %v794
        %v1090 = vunpack.c.l.b16 %v795
        %v1091 = vunpack.c.l.b16 %v796
        %v1092 = vunpack.c.l.b16 %v797
        %v1093 = vunpack.c.l.b16 %v798
        %v1094 = vunpack.c.l.b16 %v799
        %v1095 = vunpack.c.l.b16 %v800
        %v1096 = vunpack.c.l.b16 %v801
        %v1097 = vunpack.c.l.b16 %v802
        %v1098 = vunpack.c.l.b16 %v803
        %v1099 = vunpack.c.l.b16 %v804
        %v1100 = vunpack.c.l.b16 %v805
        %v1101 = vunpack.c.l.b16 %v806
        %v1102 = vunpack.c.l.b16 %v807
        %v1103 = vunpack.c.l.b16 %v808
        %v1104 = vunpack.c.l.b16 %v809
        %v1105 = vunpack.c.l.b16 %v810
        %v1106 = vunpack.c.l.b16 %v811
        %v1107 = vunpack.c.l.b16 %v812
        %v1108 = vunpack.c.l.b16 %v813
        %v1109 = vunpack.c.l.b16 %v814
        %v1110 = vunpack.c.l.b16 %v815
        %v1111 = vpack.c.b16 %v968, %v967
        %v1112 = vpack.c.b16 %v970, %v969
        %v1113 = vpack.c.b16 %v972, %v971
        %v1114 = vpack.c.b16 %v974, %v973
        %v1115 = vpack.c.b16 %v976, %v975
        %v1116 = vpack.c.b16 %v978, %v977
        %v1117 = vpack.c.b16 %v980, %v979
        %v1118 = vpack.c.b16 %v982, %v981
        %v1119 = vpack.c.b16 %v984, %v983
        %v1120 = vpack.c.b16 %v986, %v985
        %v1121 = vpack.c.b16 %v988, %v987
        %v1122 = vpack.c.b16 %v990, %v989
        %v1123 = vpack.c.b16 %v992, %v991
        %v1124 = vpack.c.b16 %v994, %v993
        %v1125 = vpack.c.b16 %v996, %v995
        %v1126 = vpack.c.b16 %v998, %v997
        %v1127 = vpack.c.b16 %v1000, %v999
        %v1128 = vpack.c.b16 %v1002, %v1001
        %v1129 = vpack.c.b16 %v1004, %v1003
        %v1130 = vpack.c.b16 %v1006, %v1005
        %v1131 = vpack.c.b16 %v1008, %v1007
        %v1132 = vpack.c.b16 %v1010, %v1009
        %v1133 = vpack.c.b16 %v1012, %v1011
        %v1134 = vpack.c.b16 %v1014, %v1013
        %v1135 = vpack.c.b16 %v1016, %v1015
        %v1136 = vpack.c.b16 %v1018, %v1017
        %v1137 = vpack.c.b16 %v1020, %v1019
        %v1138 = vpack.c.b16 %v1022, %v1021
        %v1139 = vpack.c.b16 %v1024, %v1023
        %v1140 = vpack.c.b16 %v1026, %v1025
        %v1141 = vpack.c.b16 %v1028, %v1027
        %v1142 = vpack.c.b16 %v1030, %v1029
        %v1143 = vpack.c.b16 %v1032, %v1031
        %v1144 = vpack.c.b16 %v1034, %v1033
        %v1145 = vpack.c.b16 %v1036, %v1035
        %v1146 = vpack.c.b16 %v1038, %v1037
        %v1147 = vpack.c.b16 %v1040, %v1039
        %v1148 = vpack.c.b16 %v1042, %v1041
        %v1149 = vpack.c.b16 %v1044, %v1043
        %v1150 = vpack.c.b16 %v1046, %v1045
        %v1151 = vpack.c.b16 %v1048, %v1047
        %v1152 = vpack.c.b16 %v1050, %v1049
        %v1153 = vpack.c.b16 %v1052, %v1051
        %v1154 = vpack.c.b16 %v1054, %v1053
        %v1155 = vpack.c.b16 %v1056, %v1055
        %v1156 = vpack.c.b16 %v1058, %v1057
        %v1157 = vpack.c.b16 %v1060, %v1059
        %v1158 = vpack.c.b16 %v1062, %v1061
        %v1159 = vpack.c.b16 %v1064, %v1063
        %v1160 = vpack.c.b16 %v1066, %v1065
        %v1161 = vpack.c.b16 %v1068, %v1067
        %v1162 = vpack.c.b16 %v1070, %v1069
        %v1163 = vpack.c.b16 %v1072, %v1071
        %v1164 = vpack.c.b16 %v1074, %v1073
        %v1165 = vpack.c.b16 %v1076, %v1075
        %v1166 = vpack.c.b16 %v1078, %v1077
        %v1167 = vpack.c.b16 %v1080, %v1079
        %v1168 = vpack.c.b16 %v1082, %v1081
        %v1169 = vpack.c.b16 %v1084, %v1083
        %v1170 = vpack.c.b16 %v1086, %v1085
        %v1171 = vpack.c.b16 %v1088, %v1087
        %v1172 = vpack.c.b16 %v1090, %v1089
        %v1173 = vpack.c.b16 %v1092, %v1091
        %v1174 = vpack.c.b16 %v1094, %v1093
        %v1175 = vpack.c.b16 %v1096, %v1095
        %v1176 = vpack.c.b16 %v1098, %v1097
        %v1177 = vpack.c.b16 %v1100, %v1099
        %v1178 = vpack.c.b16 %v1102, %v1101
        %v1179 = vpack.c.b16 %v1104, %v1103
        %v1180 = vpack.c.b16 %v1106, %v1105
        %v1181 = vpack.c.b16 %v1108, %v1107
        %v1182 = vpack.c.b16 %v1110, %v1109
        %1255 = vmatprep.subr.bf16.mxu0 0
        %1256 = vmatpush1.bf16.msra.mxu0 %v1111
        %1257 = vmatprep.subr.bf16.mxu0 0
        %1258 = vmatpush1.bf16.msra.mxu0 %v1112
        %1259 = vmatprep.subr.bf16.mxu0 0
        %1260 = vmatpush1.bf16.msra.mxu0 %v1113
        %1261 = vmatprep.subr.bf16.mxu0 0
        %1262 = vmatpush1.bf16.msra.mxu0 %v1114
        %1263 = vmatprep.subr.bf16.mxu0 0
        %1264 = vmatpush1.bf16.msra.mxu0 %v1115
        %1265 = vmatprep.subr.bf16.mxu0 0
        %1266 = vmatpush1.bf16.msra.mxu0 %v1116
        %1267 = vmatprep.subr.bf16.mxu0 0
        %1268 = vmatpush1.bf16.msra.mxu0 %v1117
        %1269 = vmatprep.subr.bf16.mxu0 0
        %1270 = vmatpush1.bf16.msra.mxu0 %v1118
        %1271 = vmatprep.subr.bf16.mxu0 0
        %1272 = vmatpush1.bf16.msra.mxu0 %v1119
        %1273 = vmatprep.subr.bf16.mxu0 0
        %1274 = vmatpush1.bf16.msra.mxu0 %v1120
        %1275 = vmatprep.subr.bf16.mxu0 0
        %1276 = vmatpush1.bf16.msra.mxu0 %v1121
        %1277 = vmatprep.subr.bf16.mxu0 0
        %1278 = vmatpush1.bf16.msra.mxu0 %v1122
        %1279 = vmatprep.subr.bf16.mxu0 0
        %1280 = vmatpush1.bf16.msra.mxu0 %v1123
        %1281 = vmatprep.subr.bf16.mxu0 0
        %1282 = vmatpush1.bf16.msra.mxu0 %v1124
        %1283 = vmatprep.subr.bf16.mxu0 0
        %1284 = vmatpush1.bf16.msra.mxu0 %v1125
        %1285 = vmatprep.subr.bf16.mxu0 0
        %1286 = vmatpush1.bf16.msra.mxu0 %v1126
        %1287 = vmatprep.mubr.bf16.mxu0 %v600
        %1288 = vmatmul.mubr.bf16.gmra.mrb[0].mxu0 %v568
        %v1289 = vpop.f32.mrb[0].mxu0
        %v1290 = vadd.f32 %v821, %v1289
        %v1291 = vpop.f32.mrb[0].mxu0
        %v1292 = vpop.f32.mrb[0].mxu0
        %v1293 = vadd.f32 %v821, %v1292
        %v1294 = vpop.f32.mrb[0].mxu0
        %1295 = vmatprep.mubr.bf16.mxu0 %v601
        %1296 = vmatmul.mubr.bf16.gmra.mrb[0].mxu0 %v569
        %v1297 = vpop.f32.mrb[0].mxu0
        %v1298 = vadd.f32 %v821, %v1297
        %v1299 = vpop.f32.mrb[0].mxu0
        %v1300 = vpop.f32.mrb[0].mxu0
        %v1301 = vadd.f32 %v821, %v1300
        %v1302 = vpop.f32.mrb[0].mxu0
        %1303 = vmatprep.mubr.bf16.mxu0 %v602
        %1304 = vmatmul.mubr.bf16.gmra.mrb[0].mxu0 %v570
        %v1305 = vpop.f32.mrb[0].mxu0
        %v1306 = vadd.f32 %v821, %v1305
        %v1307 = vpop.f32.mrb[0].mxu0
        %v1308 = vpop.f32.mrb[0].mxu0
        %v1309 = vadd.f32 %v821, %v1308
        %v1310 = vpop.f32.mrb[0].mxu0
        %1311 = vmatprep.mubr.bf16.mxu0 %v603
        %1312 = vmatmul.mubr.bf16.gmra.mrb[0].mxu0 %v571
        %v1313 = vpop.f32.mrb[0].mxu0
        %v1314 = vadd.f32 %v821, %v1313
        %v1315 = vpop.f32.mrb[0].mxu0
        %v1316 = vpop.f32.mrb[0].mxu0
        %v1317 = vadd.f32 %v821, %v1316
        %v1318 = vpop.f32.mrb[0].mxu0
        %1319 = vmatprep.mubr.bf16.mxu0 %v604
        %1320 = vmatmul.mubr.bf16.gmra.mrb[0].mxu0 %v572
        %v1321 = vpop.f32.mrb[0].mxu0
        %v1322 = vadd.f32 %v821, %v1321
        %v1323 = vpop.f32.mrb[0].mxu0
        %v1324 = vpop.f32.mrb[0].mxu0
        %v1325 = vadd.f32 %v821, %v1324
        %v1326 = vpop.f32.mrb[0].mxu0
        %1327 = vmatprep.mubr.bf16.mxu0 %v605
        %1328 = vmatmul.mubr.bf16.gmra.mrb[0].mxu0 %v573
        %v1329 = vpop.f32.mrb[0].mxu0
        %v1330 = vadd.f32 %v821, %v1329
        %v1331 = vpop.f32.mrb[0].mxu0
        %v1332 = vpop.f32.mrb[0].mxu0
        %v1333 = vadd.f32 %v821, %v1332
        %v1334 = vpop.f32.mrb[0].mxu0
        %1335 = vmatprep.mubr.bf16.mxu0 %v606
        %1336 = vmatmul.mubr.bf16.gmra.mrb[0].mxu0 %v574
        %v1337 = vpop.f32.mrb[0].mxu0
        %v1338 = vadd.f32 %v821, %v1337
        %v1339 = vpop.f32.mrb[0].mxu0
        %v1340 = vpop.f32.mrb[0].mxu0
        %v1341 = vadd.f32 %v821, %v1340
        %v1342 = vpop.f32.mrb[0].mxu0
        %1343 = vmatprep.mubr.bf16.mxu0 %v607
        %1344 = vmatmul.mubr.bf16.gmra.mrb[0].mxu0 %v575
        %v1345 = vpop.f32.mrb[0].mxu0
        %v1346 = vadd.f32 %v821, %v1345
        %v1347 = vpop.f32.mrb[0].mxu0
        %v1348 = vpop.f32.mrb[0].mxu0
        %v1349 = vadd.f32 %v821, %v1348
        %v1350 = vpop.f32.mrb[0].mxu0
        %1351 = vdwg.mxu0
        %1352 = vmatprep.subr.bf16.mxu0 0
        %1353 = vmatpush1.bf16.msra.mxu0 %v1127
        %1354 = vmatprep.subr.bf16.mxu0 0
        %1355 = vmatpush1.bf16.msra.mxu0 %v1128
        %1356 = vmatprep.subr.bf16.mxu0 0
        %1357 = vmatpush1.bf16.msra.mxu0 %v1129
        %1358 = vmatprep.subr.bf16.mxu0 0
        %1359 = vmatpush1.bf16.msra.mxu0 %v1130
        %1360 = vmatprep.subr.bf16.mxu0 0
        %1361 = vmatpush1.bf16.msra.mxu0 %v1131
        %1362 = vmatprep.subr.bf16.mxu0 0
        %1363 = vmatpush1.bf16.msra.mxu0 %v1132
        %1364 = vmatprep.subr.bf16.mxu0 0
        %1365 = vmatpush1.bf16.msra.mxu0 %v1133
        %1366 = vmatprep.subr.bf16.mxu0 0
        %1367 = vmatpush1.bf16.msra.mxu0 %v1134
        %1368 = vmatprep.subr.bf16.mxu0 0
        %1369 = vmatpush1.bf16.msra.mxu0 %v1135
        %1370 = vmatprep.subr.bf16.mxu0 0
        %1371 = vmatpush1.bf16.msra.mxu0 %v1136
        %1372 = vmatprep.subr.bf16.mxu0 0
        %1373 = vmatpush1.bf16.msra.mxu0 %v1137
        %1374 = vmatprep.subr.bf16.mxu0 0
        %1375 = vmatpush1.bf16.msra.mxu0 %v1138
        %1376 = vmatprep.subr.bf16.mxu0 0
        %1377 = vmatpush1.bf16.msra.mxu0 %v1139
        %1378 = vmatprep.subr.bf16.mxu0 0
        %1379 = vmatpush1.bf16.msra.mxu0 %v1140
        %1380 = vmatprep.subr.bf16.mxu0 0
        %1381 = vmatpush1.bf16.msra.mxu0 %v1141
        %1382 = vmatprep.subr.bf16.mxu0 0
        %1383 = vmatpush1.bf16.msra.mxu0 %v1142
        %1384 = vmatprep.mubr.bf16.mxu0 %v569
        %1385 = vmatmul.mubr.bf16.gmra.mrb[0].mxu0 %v632
        %v1386 = vpop.f32.mrb[0].mxu0
        %v1387 = vadd.f32 %v1290, %v1386
        %v1388 = vpop.f32.mrb[0].mxu0
        %v1389 = vpop.f32.mrb[0].mxu0
        %v1390 = vadd.f32 %v1293, %v1389
        %v1391 = vpop.f32.mrb[0].mxu0
        %1392 = vmatprep.mubr.bf16.mxu0 %v570
        %1393 = vmatmul.mubr.bf16.gmra.mrb[0].mxu0 %v633
        %v1394 = vpop.f32.mrb[0].mxu0
        %v1395 = vadd.f32 %v1298, %v1394
        %v1396 = vpop.f32.mrb[0].mxu0
        %v1397 = vpop.f32.mrb[0].mxu0
        %v1398 = vadd.f32 %v1301, %v1397
        %v1399 = vpop.f32.mrb[0].mxu0
        %1400 = vmatprep.mubr.bf16.mxu0 %v571
        %1401 = vmatmul.mubr.bf16.gmra.mrb[0].mxu0 %v634
        %v1402 = vpop.f32.mrb[0].mxu0
        %v1403 = vadd.f32 %v1306, %v1402
        %v1404 = vpop.f32.mrb[0].mxu0
        %v1405 = vpop.f32.mrb[0].mxu0
        %v1406 = vadd.f32 %v1309, %v1405
        %v1407 = vpop.f32.mrb[0].mxu0
        %1408 = vmatprep.mubr.bf16.mxu0 %v572
        %1409 = vmatmul.mubr.bf16.gmra.mrb[0].mxu0 %v635
        %v1410 = vpop.f32.mrb[0].mxu0
        %v1411 = vadd.f32 %v1314, %v1410
        %v1412 = vpop.f32.mrb[0].mxu0
        %v1413 = vpop.f32.mrb[0].mxu0
        %v1414 = vadd.f32 %v1317, %v1413
        %v1415 = vpop.f32.mrb[0].mxu0
        %1416 = vmatprep.mubr.bf16.mxu0 %v573
        %1417 = vmatmul.mubr.bf16.gmra.mrb[0].mxu0 %v636
        %v1418 = vpop.f32.mrb[0].mxu0
        %v1419 = vadd.f32 %v1322, %v1418
        %v1420 = vpop.f32.mrb[0].mxu0
        %v1421 = vpop.f32.mrb[0].mxu0
        %v1422 = vadd.f32 %v1325, %v1421
        %v1423 = vpop.f32.mrb[0].mxu0
        %1424 = vmatprep.mubr.bf16.mxu0 %v574
        %1425 = vmatmul.mubr.bf16.gmra.mrb[0].mxu0 %v637
        %v1426 = vpop.f32.mrb[0].mxu0
        %v1427 = vadd.f32 %v1330, %v1426
        %v1428 = vpop.f32.mrb[0].mxu0
        %v1429 = vpop.f32.mrb[0].mxu0
        %v1430 = vadd.f32 %v1333, %v1429
        %v1431 = vpop.f32.mrb[0].mxu0
        %1432 = vmatprep.mubr.bf16.mxu0 %v575
        %1433 = vmatmul.mubr.bf16.gmra.mrb[0].mxu0 %v638
        %v1434 = vpop.f32.mrb[0].mxu0
        %v1435 = vadd.f32 %v1338, %v1434
        %v1436 = vpop.f32.mrb[0].mxu0
        %v1437 = vpop.f32.mrb[0].mxu0
        %v1438 = vadd.f32 %v1341, %v1437
        %v1439 = vpop.f32.mrb[0].mxu0
        %1440 = vmatprep.mubr.bf16.mxu0 %v650
        %1441 = vmatmul.mubr.bf16.gmra.mrb[0].mxu0 %v639
        %v1442 = vpop.f32.mrb[0].mxu0
        %v1443 = vadd.f32 %v1346, %v1442
        %v1444 = vpop.f32.mrb[0].mxu0
        %v1445 = vpop.f32.mrb[0].mxu0
        %v1446 = vadd.f32 %v1349, %v1445
        %v1447 = vpop.f32.mrb[0].mxu0
        %1448 = vdwg.mxu0
        %1449 = vmatprep.subr.bf16.mxu0 0
        %1450 = vmatpush1.bf16.msra.mxu0 %v1143
        %1451 = vmatprep.subr.bf16.mxu0 0
        %1452 = vmatpush1.bf16.msra.mxu0 %v1144
        %1453 = vmatprep.subr.bf16.mxu0 0
        %1454 = vmatpush1.bf16.msra.mxu0 %v1145
        %1455 = vmatprep.subr.bf16.mxu0 0
        %1456 = vmatpush1.bf16.msra.mxu0 %v1146
        %1457 = vmatprep.subr.bf16.mxu0 0
        %1458 = vmatpush1.bf16.msra.mxu0 %v1147
        %1459 = vmatprep.subr.bf16.mxu0 0
        %1460 = vmatpush1.bf16.msra.mxu0 %v1148
        %1461 = vmatprep.subr.bf16.mxu0 0
        %1462 = vmatpush1.bf16.msra.mxu0 %v1149
        %1463 = vmatprep.subr.bf16.mxu0 0
        %1464 = vmatpush1.bf16.msra.mxu0 %v1150
        %1465 = vmatprep.subr.bf16.mxu0 0
        %1466 = vmatpush1.bf16.msra.mxu0 %v1151
        %1467 = vmatprep.subr.bf16.mxu0 0
        %1468 = vmatpush1.bf16.msra.mxu0 %v1152
        %1469 = vmatprep.subr.bf16.mxu0 0
        %1470 = vmatpush1.bf16.msra.mxu0 %v1153
        %1471 = vmatprep.subr.bf16.mxu0 0
        %1472 = vmatpush1.bf16.msra.mxu0 %v1154
        %1473 = vmatprep.subr.bf16.mxu0 0
        %1474 = vmatpush1.bf16.msra.mxu0 %v1155
        %1475 = vmatprep.subr.bf16.mxu0 0
        %1476 = vmatpush1.bf16.msra.mxu0 %v1156
        %1477 = vmatprep.subr.bf16.mxu0 0
        %1478 = vmatpush1.bf16.msra.mxu0 %v1157
        %1479 = vmatprep.subr.bf16.mxu0 0
        %1480 = vmatpush1.bf16.msra.mxu0 %v1158
        %1481 = vmatprep.mubr.bf16.mxu0 %v633
        %1482 = vmatmul.mubr.bf16.gmra.mrb[0].mxu0 %v601
        %v1483 = vpop.f32.mrb[0].mxu0
        %v1484 = vadd.f32 %v1387, %v1483
        %v1485 = vpop.f32.mrb[0].mxu0
        %v1486 = vpop.f32.mrb[0].mxu0
        %v1487 = vadd.f32 %v1390, %v1486
        %v1488 = vpop.f32.mrb[0].mxu0
        %1489 = vmatprep.mubr.bf16.mxu0 %v634
        %1490 = vmatmul.mubr.bf16.gmra.mrb[0].mxu0 %v602
        %v1491 = vpop.f32.mrb[0].mxu0
        %v1492 = vadd.f32 %v1395, %v1491
        %v1493 = vpop.f32.mrb[0].mxu0
        %v1494 = vpop.f32.mrb[0].mxu0
        %v1495 = vadd.f32 %v1398, %v1494
        %v1496 = vpop.f32.mrb[0].mxu0
        %1497 = vmatprep.mubr.bf16.mxu0 %v635
        %1498 = vmatmul.mubr.bf16.gmra.mrb[0].mxu0 %v603
        %v1499 = vpop.f32.mrb[0].mxu0
        %v1500 = vadd.f32 %v1403, %v1499
        %v1501 = vpop.f32.mrb[0].mxu0
        %v1502 = vpop.f32.mrb[0].mxu0
        %v1503 = vadd.f32 %v1406, %v1502
        %v1504 = vpop.f32.mrb[0].mxu0
        %1505 = vmatprep.mubr.bf16.mxu0 %v636
        %1506 = vmatmul.mubr.bf16.gmra.mrb[0].mxu0 %v604
        %v1507 = vpop.f32.mrb[0].mxu0
        %v1508 = vadd.f32 %v1411, %v1507
        %v1509 = vpop.f32.mrb[0].mxu0
        %v1510 = vpop.f32.mrb[0].mxu0
        %v1511 = vadd.f32 %v1414, %v1510
        %v1512 = vpop.f32.mrb[0].mxu0
        %1513 = vmatprep.mubr.bf16.mxu0 %v637
        %1514 = vmatmul.mubr.bf16.gmra.mrb[0].mxu0 %v605
        %v1515 = vpop.f32.mrb[0].mxu0
        %v1516 = vadd.f32 %v1419, %v1515
        %v1517 = vpop.f32.mrb[0].mxu0
        %v1518 = vpop.f32.mrb[0].mxu0
        %v1519 = vadd.f32 %v1422, %v1518
        %v1520 = vpop.f32.mrb[0].mxu0
        %1521 = vmatprep.mubr.bf16.mxu0 %v638
        %1522 = vmatmul.mubr.bf16.gmra.mrb[0].mxu0 %v606
        %v1523 = vpop.f32.mrb[0].mxu0
        %v1524 = vadd.f32 %v1427, %v1523
        %v1525 = vpop.f32.mrb[0].mxu0
        %v1526 = vpop.f32.mrb[0].mxu0
        %v1527 = vadd.f32 %v1430, %v1526
        %v1528 = vpop.f32.mrb[0].mxu0
        %1529 = vmatprep.mubr.bf16.mxu0 %v639
        %1530 = vmatmul.mubr.bf16.gmra.mrb[0].mxu0 %v607
        %v1531 = vpop.f32.mrb[0].mxu0
        %v1532 = vadd.f32 %v1435, %v1531
        %v1533 = vpop.f32.mrb[0].mxu0
        %v1534 = vpop.f32.mrb[0].mxu0
        %v1535 = vadd.f32 %v1438, %v1534
        %v1536 = vpop.f32.mrb[0].mxu0
        %1537 = vmatprep.mubr.bf16.mxu0 %v658
        %1538 = vmatmul.mubr.bf16.gmra.mrb[0].mxu0 %v654
        %v1539 = vpop.f32.mrb[0].mxu0
        %v1540 = vadd.f32 %v1443, %v1539
        %v1541 = vpop.f32.mrb[0].mxu0
        %v1542 = vpop.f32.mrb[0].mxu0
        %v1543 = vadd.f32 %v1446, %v1542
        %v1544 = vpop.f32.mrb[0].mxu0
        %1545 = vdwg.mxu0
        %1546 = vmatprep.subr.bf16.mxu0 0
        %1547 = vmatpush1.bf16.msra.mxu0 %v1159
        %1548 = vmatprep.subr.bf16.mxu0 0
        %1549 = vmatpush1.bf16.msra.mxu0 %v1160
        %1550 = vmatprep.subr.bf16.mxu0 0
        %1551 = vmatpush1.bf16.msra.mxu0 %v1161
        %1552 = vmatprep.subr.bf16.mxu0 0
        %1553 = vmatpush1.bf16.msra.mxu0 %v1162
        %1554 = vmatprep.subr.bf16.mxu0 0
        %1555 = vmatpush1.bf16.msra.mxu0 %v1163
        %1556 = vmatprep.subr.bf16.mxu0 0
        %1557 = vmatpush1.bf16.msra.mxu0 %v1164
        %1558 = vmatprep.subr.bf16.mxu0 0
        %1559 = vmatpush1.bf16.msra.mxu0 %v1165
        %1560 = vmatprep.subr.bf16.mxu0 0
        %1561 = vmatpush1.bf16.msra.mxu0 %v1166
        %1562 = vmatprep.subr.bf16.mxu0 0
        %1563 = vmatpush1.bf16.msra.mxu0 %v1167
        %1564 = vmatprep.subr.bf16.mxu0 0
        %1565 = vmatpush1.bf16.msra.mxu0 %v1168
        %1566 = vmatprep.subr.bf16.mxu0 0
        %1567 = vmatpush1.bf16.msra.mxu0 %v1169
        %1568 = vmatprep.subr.bf16.mxu0 0
        %1569 = vmatpush1.bf16.msra.mxu0 %v1170
        %1570 = vmatprep.subr.bf16.mxu0 0
        %1571 = vmatpush1.bf16.msra.mxu0 %v1171
        %1572 = vmatprep.subr.bf16.mxu0 0
        %1573 = vmatpush1.bf16.msra.mxu0 %v1172
        %1574 = vmatprep.subr.bf16.mxu0 0
        %1575 = vmatpush1.bf16.msra.mxu0 %v1173
        %1576 = vmatprep.subr.bf16.mxu0 0
        %1577 = vmatpush1.bf16.msra.mxu0 %v1174
        %1578 = vmatprep.mubr.bf16.mxu0 %v602
        %1579 = vmatmul.mubr.bf16.gmra.mrb[0].mxu0 %v570
        %v1580 = vpop.f32.mrb[0].mxu0
        %v1581 = vadd.f32 %v1484, %v1580
        %v1582 = vpop.f32.mrb[0].mxu0
        %v1583 = vpop.f32.mrb[0].mxu0
        %v1584 = vadd.f32 %v1487, %v1583
        %v1585 = vpop.f32.mrb[0].mxu0
        %1586 = vmatprep.mubr.bf16.mxu0 %v603
        %1587 = vmatmul.mubr.bf16.gmra.mrb[0].mxu0 %v571
        %v1588 = vpop.f32.mrb[0].mxu0
        %v1589 = vadd.f32 %v1492, %v1588
        %v1590 = vpop.f32.mrb[0].mxu0
        %v1591 = vpop.f32.mrb[0].mxu0
        %v1592 = vadd.f32 %v1495, %v1591
        %v1593 = vpop.f32.mrb[0].mxu0
        %1594 = vmatprep.mubr.bf16.mxu0 %v604
        %1595 = vmatmul.mubr.bf16.gmra.mrb[0].mxu0 %v572
        %v1596 = vpop.f32.mrb[0].mxu0
        %v1597 = vadd.f32 %v1500, %v1596
        %v1598 = vpop.f32.mrb[0].mxu0
        %v1599 = vpop.f32.mrb[0].mxu0
        %v1600 = vadd.f32 %v1503, %v1599
        %v1601 = vpop.f32.mrb[0].mxu0
        %1602 = vmatprep.mubr.bf16.mxu0 %v605
        %1603 = vmatmul.mubr.bf16.gmra.mrb[0].mxu0 %v573
        %v1604 = vpop.f32.mrb[0].mxu0
        %v1605 = vadd.f32 %v1508, %v1604
        %v1606 = vpop.f32.mrb[0].mxu0
        %v1607 = vpop.f32.mrb[0].mxu0
        %v1608 = vadd.f32 %v1511, %v1607
        %v1609 = vpop.f32.mrb[0].mxu0
        %1610 = vmatprep.mubr.bf16.mxu0 %v606
        %1611 = vmatmul.mubr.bf16.gmra.mrb[0].mxu0 %v574
        %v1612 = vpop.f32.mrb[0].mxu0
        %v1613 = vadd.f32 %v1516, %v1612
        %v1614 = vpop.f32.mrb[0].mxu0
        %v1615 = vpop.f32.mrb[0].mxu0
        %v1616 = vadd.f32 %v1519, %v1615
        %v1617 = vpop.f32.mrb[0].mxu0
        %1618 = vmatprep.mubr.bf16.mxu0 %v607
        %1619 = vmatmul.mubr.bf16.gmra.mrb[0].mxu0 %v575
        %v1620 = vpop.f32.mrb[0].mxu0
        %v1621 = vadd.f32 %v1524, %v1620
        %v1622 = vpop.f32.mrb[0].mxu0
        %v1623 = vpop.f32.mrb[0].mxu0
        %v1624 = vadd.f32 %v1527, %v1623
        %v1625 = vpop.f32.mrb[0].mxu0
        %1626 = vmatprep.mubr.bf16.mxu0 %v654
        %1627 = vmatmul.mubr.bf16.gmra.mrb[0].mxu0 %v650
        %v1628 = vpop.f32.mrb[0].mxu0
        %v1629 = vadd.f32 %v1532, %v1628
        %v1630 = vpop.f32.mrb[0].mxu0
        %v1631 = vpop.f32.mrb[0].mxu0
        %v1632 = vadd.f32 %v1535, %v1631
        %v1633 = vpop.f32.mrb[0].mxu0
        %1634 = vmatprep.mubr.bf16.mxu0 %v666
        %1635 = vmatmul.mubr.bf16.gmra.mrb[0].mxu0 %v662
        %v1636 = vpop.f32.mrb[0].mxu0
        %v1637 = vadd.f32 %v1540, %v1636
        %v1638 = vpop.f32.mrb[0].mxu0
        %v1639 = vpop.f32.mrb[0].mxu0
        %v1640 = vadd.f32 %v1543, %v1639
        %v1641 = vpop.f32.mrb[0].mxu0
        %1642 = vdwg.mxu0
        %1643 = vmatprep.subr.bf16.mxu0 0
        %1644 = vmatpush1.bf16.msra.mxu0 %v1175
        %1645 = vmatprep.subr.bf16.mxu0 0
        %1646 = vmatpush1.bf16.msra.mxu0 %v1176
        %1647 = vmatprep.subr.bf16.mxu0 0
        %1648 = vmatpush1.bf16.msra.mxu0 %v1177
        %1649 = vmatprep.subr.bf16.mxu0 0
        %1650 = vmatpush1.bf16.msra.mxu0 %v1178
        %1651 = vmatprep.subr.bf16.mxu0 0
        %1652 = vmatpush1.bf16.msra.mxu0 %v1179
        %1653 = vmatprep.subr.bf16.mxu0 0
        %1654 = vmatpush1.bf16.msra.mxu0 %v1180
        %1655 = vmatprep.subr.bf16.mxu0 0
        %1656 = vmatpush1.bf16.msra.mxu0 %v1181
        %1657 = vmatprep.subr.bf16.mxu0 0
        %1658 = vmatpush1.bf16.msra.mxu0 %v1182
        %1659 = vmatprep.subr.bf16.mxu0 0
        %1660 = vmatpush1.bf16.msra.mxu0 0
        %1661 = vmatprep.subr.bf16.mxu0 0
        %1662 = vmatpush1.bf16.msra.mxu0 0
        %1663 = vmatprep.subr.bf16.mxu0 0
        %1664 = vmatpush1.bf16.msra.mxu0 0
        %1665 = vmatprep.subr.bf16.mxu0 0
        %1666 = vmatpush1.bf16.msra.mxu0 0
        %1667 = vmatprep.subr.bf16.mxu0 0
        %1668 = vmatpush1.bf16.msra.mxu0 0
        %1669 = vmatprep.subr.bf16.mxu0 0
        %1670 = vmatpush1.bf16.msra.mxu0 0
        %1671 = vmatprep.subr.bf16.mxu0 0
        %1672 = vmatpush1.bf16.msra.mxu0 0
        %1673 = vmatprep.subr.bf16.mxu0 0
        %1674 = vmatpush1.bf16.msra.mxu0 0
        %1675 = vmatprep.mubr.bf16.mxu0 0
        %1676 = vmatmul.mubr.bf16.gmra.mrb[0].mxu0 %v634
        %v1677 = vpop.f32.mrb[0].mxu0
        %v1678 = vadd.f32 %v1581, %v1677
        %v1679 = vpop.f32.mrb[0].mxu0
        %v1680 = vpop.f32.mrb[0].mxu0
        %v1681 = vadd.f32 %v1584, %v1680
        %v1682 = vpop.f32.mrb[0].mxu0
        %1683 = vmatprep.mubr.bf16.mxu0 0
        %1684 = vmatmul.mubr.bf16.gmra.mrb[0].mxu0 %v635
        %v1685 = vpop.f32.mrb[0].mxu0
        %v1686 = vadd.f32 %v1589, %v1685
        %v1687 = vpop.f32.mrb[0].mxu0
        %v1688 = vpop.f32.mrb[0].mxu0
        %v1689 = vadd.f32 %v1592, %v1688
        %v1690 = vpop.f32.mrb[0].mxu0
        %1691 = vmatprep.mubr.bf16.mxu0 0
        %1692 = vmatmul.mubr.bf16.gmra.mrb[0].mxu0 %v636
        %v1693 = vpop.f32.mrb[0].mxu0
        %v1694 = vadd.f32 %v1597, %v1693
        %v1695 = vpop.f32.mrb[0].mxu0
        %v1696 = vpop.f32.mrb[0].mxu0
        %v1697 = vadd.f32 %v1600, %v1696
        %v1698 = vpop.f32.mrb[0].mxu0
        %1699 = vmatprep.mubr.bf16.mxu0 0
        %1700 = vmatmul.mubr.bf16.gmra.mrb[0].mxu0 %v637
        %v1701 = vpop.f32.mrb[0].mxu0
        %v1702 = vadd.f32 %v1605, %v1701
        %v1703 = vpop.f32.mrb[0].mxu0
        %v1704 = vpop.f32.mrb[0].mxu0
        %v1705 = vadd.f32 %v1608, %v1704
        %v1706 = vpop.f32.mrb[0].mxu0
        %1707 = vmatprep.mubr.bf16.mxu0 0
        %1708 = vmatmul.mubr.bf16.gmra.mrb[0].mxu0 %v638
        %v1709 = vpop.f32.mrb[0].mxu0
        %v1710 = vadd.f32 %v1613, %v1709
        %v1711 = vpop.f32.mrb[0].mxu0
        %v1712 = vpop.f32.mrb[0].mxu0
        %v1713 = vadd.f32 %v1616, %v1712
        %v1714 = vpop.f32.mrb[0].mxu0
        %1715 = vmatprep.mubr.bf16.mxu0 0
        %1716 = vmatmul.mubr.bf16.gmra.mrb[0].mxu0 %v639
        %v1717 = vpop.f32.mrb[0].mxu0
        %v1718 = vadd.f32 %v1621, %v1717
        %v1719 = vpop.f32.mrb[0].mxu0
        %v1720 = vpop.f32.mrb[0].mxu0
        %v1721 = vadd.f32 %v1624, %v1720
        %v1722 = vpop.f32.mrb[0].mxu0
        %1723 = vmatprep.mubr.bf16.mxu0 0
        %1724 = vmatmul.mubr.bf16.gmra.mrb[0].mxu0 %v658
        %v1725 = vpop.f32.mrb[0].mxu0
        %v1726 = vadd.f32 %v1629, %v1725
        %v1727 = vpop.f32.mrb[0].mxu0
        %v1728 = vpop.f32.mrb[0].mxu0
        %v1729 = vadd.f32 %v1632, %v1728
        %v1730 = vpop.f32.mrb[0].mxu0
        %1731 = vmatprep.mubr.bf16.mxu0 0
        %1732 = vmatmul.mubr.bf16.gmra.mrb[0].mxu0 %v670
        %v1733 = vpop.f32.mrb[0].mxu0
        %v1734 = vadd.f32 %v1637, %v1733
        %v1735 = vpop.f32.mrb[0].mxu0
        %v1736 = vpop.f32.mrb[0].mxu0
        %v1737 = vadd.f32 %v1640, %v1736
        %v1738 = vpop.f32.mrb[0].mxu0
        %1739 = vdwg.mxu0
        %v1740 = vxor.u32 %v1678, 2147483648
        %v1741 = vxor.u32 %v1681, 2147483648
        %v1742 = vxor.u32 %v1686, 2147483648
        %v1743 = vxor.u32 %v1689, 2147483648
        %v1744 = vxor.u32 %v1694, 2147483648
        %v1745 = vxor.u32 %v1697, 2147483648
        %v1746 = vxor.u32 %v1702, 2147483648
        %v1747 = vxor.u32 %v1705, 2147483648
        %v1748 = vxor.u32 %v1710, 2147483648
        %v1749 = vxor.u32 %v1713, 2147483648
        %v1750 = vxor.u32 %v1718, 2147483648
        %v1751 = vxor.u32 %v1721, 2147483648
        %v1752 = vxor.u32 %v1726, 2147483648
        %v1753 = vxor.u32 %v1729, 2147483648
        %v1754 = vxor.u32 %v1734, 2147483648
        %v1755 = vxor.u32 %v1737, 2147483648
        %v1756 = vmul.f32 %v1740, 1.442695
        %v1757 = vpow.pop %v1756
        %v1758 = vmul.f32 %v1741, 1.442695
        %v1759 = vpow.pop %v1758
        %v1760 = vmul.f32 %v1742, 1.442695
        %v1761 = vpow.pop %v1760
        %v1762 = vmul.f32 %v1743, 1.442695
        %v1763 = vpow.pop %v1762
        %v1764 = vmul.f32 %v1744, 1.442695
        %v1765 = vpow.pop %v1764
        %v1766 = vmul.f32 %v1745, 1.442695
        %v1767 = vpow.pop %v1766
        %v1768 = vmul.f32 %v1746, 1.442695
        %v1769 = vpow.pop %v1768
        %v1770 = vmul.f32 %v1747, 1.442695
        %v1771 = vpow.pop %v1770
        %v1772 = vmul.f32 %v1748, 1.442695
        %v1773 = vpow.pop %v1772
        %v1774 = vmul.f32 %v1749, 1.442695
        %v1775 = vpow.pop %v1774
        %v1776 = vmul.f32 %v1750, 1.442695
        %v1777 = vpow.pop %v1776
        %v1778 = vmul.f32 %v1751, 1.442695
        %v1779 = vpow.pop %v1778
        %v1780 = vmul.f32 %v1752, 1.442695
        %v1781 = vpow.pop %v1780
        %v1782 = vmul.f32 %v1753, 1.442695
        %v1783 = vpow.pop %v1782
        %v1784 = vmul.f32 %v1754, 1.442695
        %v1785 = vpow.pop %v1784
        %v1786 = vmul.f32 %v1755, 1.442695
        %v1787 = vpow.pop %v1786
        %v1788 = vadd.f32 %v1757, 1.0
        %v1789 = vadd.f32 %v1759, 1.0
        %v1790 = vadd.f32 %v1761, 1.0
        %v1791 = vadd.f32 %v1763, 1.0
        %v1792 = vadd.f32 %v1765, 1.0
        %v1793 = vadd.f32 %v1767, 1.0
        %v1794 = vadd.f32 %v1769, 1.0
        %v1795 = vadd.f32 %v1771, 1.0
        %v1796 = vadd.f32 %v1773, 1.0
        %v1797 = vadd.f32 %v1775, 1.0
        %v1798 = vadd.f32 %v1777, 1.0
        %v1799 = vadd.f32 %v1779, 1.0
        %v1800 = vadd.f32 %v1781, 1.0
        %v1801 = vadd.f32 %v1783, 1.0
        %v1802 = vadd.f32 %v1785, 1.0
        %v1803 = vadd.f32 %v1787, 1.0
        %v1804 = vrcp.pop %v1788
        %v1805 = vmul.f32 1.0, %v1804
        %v1806 = vrcp.pop %v1789
        %v1807 = vmul.f32 1.0, %v1806
        %v1808 = vrcp.pop %v1790
        %v1809 = vmul.f32 1.0, %v1808
        %v1810 = vrcp.pop %v1791
        %v1811 = vmul.f32 1.0, %v1810
        %v1812 = vrcp.pop %v1792
        %v1813 = vmul.f32 1.0, %v1812
        %v1814 = vrcp.pop %v1793
        %v1815 = vmul.f32 1.0, %v1814
        %v1816 = vrcp.pop %v1794
        %v1817 = vmul.f32 1.0, %v1816
        %v1818 = vrcp.pop %v1795
        %v1819 = vmul.f32 1.0, %v1818
        %v1820 = vrcp.pop %v1796
        %v1821 = vmul.f32 1.0, %v1820
        %v1822 = vrcp.pop %v1797
        %v1823 = vmul.f32 1.0, %v1822
        %v1824 = vrcp.pop %v1798
        %v1825 = vmul.f32 1.0, %v1824
        %v1826 = vrcp.pop %v1799
        %v1827 = vmul.f32 1.0, %v1826
        %v1828 = vrcp.pop %v1800
        %v1829 = vmul.f32 1.0, %v1828
        %v1830 = vrcp.pop %v1801
        %v1831 = vmul.f32 1.0, %v1830
        %v1832 = vrcp.pop %v1802
        %v1833 = vmul.f32 1.0, %v1832
        %v1834 = vrcp.pop %v1803
        %v1835 = vmul.f32 1.0, %v1834
        %v1836 = vmul.f32 %v1678, %v1805
        %v1837 = vmul.f32 %v1681, %v1807
        %v1838 = vmul.f32 %v1686, %v1809
        %v1839 = vmul.f32 %v1689, %v1811
        %v1840 = vmul.f32 %v1694, %v1813
        %v1841 = vmul.f32 %v1697, %v1815
        %v1842 = vmul.f32 %v1702, %v1817
        %v1843 = vmul.f32 %v1705, %v1819
        %v1844 = vmul.f32 %v1710, %v1821
        %v1845 = vmul.f32 %v1713, %v1823
        %v1846 = vmul.f32 %v1718, %v1825
        %v1847 = vmul.f32 %v1721, %v1827
        %v1848 = vmul.f32 %v1726, %v1829
        %v1849 = vmul.f32 %v1729, %v1831
        %v1850 = vmul.f32 %v1734, %v1833
        %v1851 = vmul.f32 %v1737, %v1835
        %1852 = vst [vmem:[%s151] sm:$0xff] %v1836
        %1853 = vst [vmem:[%s151 + $0x8] sm:$0xff] %v1837
        %1854 = vst [vmem:[%s151 + $0x10] sm:$0xff] %v1838
        %1855 = vst [vmem:[%s151 + $0x18] sm:$0xff] %v1839
        %1856 = vst [vmem:[%s151 + $0x20] sm:$0xff] %v1840
        %1857 = vst [vmem:[%s151 + $0x28] sm:$0xff] %v1841
        %1858 = vst [vmem:[%s151 + $0x30] sm:$0xff] %v1842
        %1859 = vst [vmem:[%s151 + $0x38] sm:$0xff] %v1843
        %1860 = vst [vmem:[%s151 + $0x40] sm:$0xff] %v1844
        %1861 = vst [vmem:[%s151 + $0x48] sm:$0xff] %v1845
        %1862 = vst [vmem:[%s151 + $0x50] sm:$0xff] %v1846
        %1863 = vst [vmem:[%s151 + $0x58] sm:$0xff] %v1847
        %1864 = vst [vmem:[%s151 + $0x60] sm:$0xff] %v1848
        %1865 = vst [vmem:[%s151 + $0x68] sm:$0xff] %v1849
        %1866 = vst [vmem:[%s151 + $0x70] sm:$0xff] %v1850
        %1867 = vst [vmem:[%s151 + $0x78] sm:$0xff] %v1851
        %s1868 = sand.u32 %s82, 1
        %s1869 = scalar_lea.sflag [#allocation6], %s1868
        %s1870 = sand.u32 %s82, 1
        %s1871 = smul.addr %s1870, 128
        %s1872 = scalar_lea.vmem [#allocation7], %s1871
        // Predicated region
        $region37: #{tpu_custom_call.1} parent=27 // pred_check
          %p1873 = pneg %p92
        $region38: #{tpu_custom_call.1} parent=27 // pred_check_branch
          %1875 = sbr.rel (%p1873) target = $region40
        $region39: #{tpu_custom_call.1} parent=27 // pred_region
          %s1876 = smul.u32 8, %s23
          %s1878 = ssub.s32 2048, 2048
          %1879 = vsyncadd %s1869, %s1878
          %s1880 = smul.addr %s1876, 2
          %s1881 = smul.addr %s22, 32
          %s1882 = sadd.s32 %s1880, %s1881
          %s1883 = smul.addr %s1882, 128
          %s1884 = scalar_lea.hbm %s3, %s1883
          %s1885 = sshll.u32 %s1872, 4
          %s1886 = int_to_ptr.vmem [resolvable:$true] %s1885
          %1891 = dma.vmem_to_hbm [thread:$0]  %s1886, 2048, %s1884, %s1869, 128, 128, 8
        $region40: #{tpu_custom_call.1} parent=27 // pred_fallthru
          _
      $region28: #{tpu_custom_call.1} parent=5 // pred_fallthru
        _
      %p1892 = scmp.le.s32.totalorder 2, %s13
      // Predicated region
      $region41: #{tpu_custom_call.1} parent=5 // pred_check
        %p1893 = pneg %p1892
      $region42: #{tpu_custom_call.1} parent=5 // pred_check_branch
        %1895 = sbr.rel (%p1893) target = $region44
      $region43: #{tpu_custom_call.1} parent=5 // pred_region
        %s1896 = ssub.s32 %s13, 2
        // Predicated region
        $region45: #{tpu_custom_call.1} parent=43 // pred_check
          %p1897 = pneg %p98
        $region46: #{tpu_custom_call.1} parent=43 // pred_check_branch
          %1899 = sbr.rel (%p1897) target = $region48
        $region47: #{tpu_custom_call.1} parent=43 // pred_region
          %s1900 = sand.u32 %s83, 1
          %s1901 = scalar_lea.sflag [#allocation6], %s1900
          %s1902 = sand.u32 %s83, 1
          %s1903 = smul.addr %s1902, 128
          %s1904 = scalar_lea.vmem [#allocation7], %s1903
          %1905 = dma.done %s1901, 2048
        $region48: #{tpu_custom_call.1} parent=43 // pred_fallthru
          _
      $region44: #{tpu_custom_call.1} parent=5 // pred_fallthru
        _
    $region6: #{tpu_custom_call.1} parent=1 // loop_footer
      %s17 = sadd.s32 1, %s13
    $region7: #{tpu_custom_call.1} parent=1 // loop_footer_branch
      %12 = sbr.rel target = $region3
    $region8: #{tpu_custom_call.1} parent=1 // loop_exit
      _
    %1906 = vsyncpa [#allocation5], 1
    %s1907 = scalar_lea.sflag [#allocation5], 1
    %1908 = vsyncpa %s1907, 1
    %1909 = vsyncpa [#allocation6], 1
    %s1910 = scalar_lea.sflag [#allocation6], 1
    %1911 = vsyncpa %s1910, 1
  %1912 = vsyncmov [#allocation3]
  %s1913 = vpop.sfrf %1912
  %p1914 = scmp.eq.s32.totalorder %s1913, 0
  %p1915 = pneg %p1914
  %1917 = shalt.err (%p1915)

</llo_original>
